<compile_context>
chip_gen: v7x
topology: tpu7x:2x2x1
jax: 0.10.0
libtpu: 0.0.40
codegen_flags: <defaults>
</compile_context>

<pallas_src>
import jax
import jax.numpy as jnp
from jax.experimental import pallas as pl
from jax.experimental.pallas import tpu as pltpu

# ---------------------------------------------------------------------------
# configuration (small, consistent with the module)
N_BATCH, C_IN, H, W = 2, 3, 16, 16      # input  x: [N, C_in, H, W]
C_CLS = 4                               # BNN output classes (log_score channel)
S_SAMPLES = 4                           # cfg['nbr_f_samples']
METRICS = sorted(['coef_var', 'entropy', 'mean_score', 'snr', 'var'])
M_METRICS = len(METRICS)                # 5
K_HID = 2 * M_METRICS                   # hidden channels in MetricRegression

STAT_NAMES = ('mean_score', 'entropy', 'var_aleatoric', 'var_epistemic', 'var',
              'snr', 'dispersion', 'coef_var', 'rel_entropy', 'rel_entropy_inv')
OUT_NAMES = STAT_NAMES + ('log_score', 'fused_score')


# ---------------------------------------------------------------------------
# Fused kernel: BNN samples + _sample_all statistics + MetricRegression.
def _fused_kernel(x_ref, w_ref, w1_ref, b1_ref, w2_ref,
                  mean_ref, ent_ref, va_ref, ve_ref, var_ref,
                  snr_ref, disp_ref, cv_ref, re_ref, rei_ref,
                  ls_ref, fs_ref):
    x = x_ref[0]                                   # (C_in, P)   one batch elem
    w = w_ref[...]                                 # (S, C, C_in) sampled weights
    S, C, Cin = w.shape

    # ---- stage 1: S BNN forwards = 1x1 conv + log_softmax over C ----------
    # Unrolled FMAs over C_in (no (C,Cin,P) intermediate, no MXU for depth-3 dots).
    logits = w[:, :, 0:1] * x[0:1, :][None]                       # (S, C, P)
    for i in range(1, Cin):
        logits = logits + w[:, :, i:i + 1] * x[i:i + 1, :][None]
    m = jnp.max(logits, axis=1, keepdims=True)
    lse = jnp.log(jnp.sum(jnp.exp(logits - m), axis=1, keepdims=True)) + m
    ls = logits - lse                              # per-sample log_score (S,C,P)
    p = jnp.exp(ls)                                # per-sample score

    # ---- stage 2: _sample_all statistics over the S samples ---------------
    inv_s = jnp.float32(1.0 / S)
    mean = jnp.sum(p, axis=0) * inv_s                             # (C, P)
    ent = -jnp.sum(p * ls, axis=0) * inv_s
    va = jnp.sum(p - p * p, axis=0) * inv_s
    d = p - mean[None]
    ve = jnp.sum(d * d, axis=0) * inv_s
    var = va + ve
    eps = jnp.float32(1e-10)
    snr = mean / (var + eps)
    disp = var / (mean + eps)
    cv = jnp.sqrt(var + eps) / (mean + eps)
    re = ent / (mean + eps)
    rei = mean / (ent + eps)

    mean_ref[...] = mean[None]
    ent_ref[...] = ent[None]
    va_ref[...] = va[None]
    ve_ref[...] = ve[None]
    var_ref[...] = var[None]
    snr_ref[...] = snr[None]
    disp_ref[...] = disp[None]
    cv_ref[...] = cv[None]
    re_ref[...] = re[None]
    rei_ref[...] = rei[None]

    # ---- stage 3: MetricRegression (BN folded into w1/b1 in the wrapper) --
    # metrics in sorted order: coef_var, entropy, mean_score, snr, var
    metrics = (cv, ent, mean, snr, var)
    w1 = w1_ref[...]                               # (K, M)  BN-folded conv1
    b1 = b1_ref[...]                               # (K, 1)  BN-folded bias
    w2 = w2_ref[...]                               # (K, 1)  conv2
    h = None                                       # (K, C, P)
    for mi, metric in enumerate(metrics):          # unrolled FMAs over M
        term = w1[:, mi:mi + 1, None] * metric[None, :, :]
        h = term if h is None else h + term
    h = jnp.maximum(h + b1[:, :, None], 0.0)       # +bias, ReLU
    z = jnp.sum(w2[:, :, None] * h, axis=0)        # (C, P)
    mz = jnp.max(z, axis=0, keepdims=True)
    lsez = jnp.log(jnp.sum(jnp.exp(z - mz), axis=0, keepdims=True)) + mz
    log_score = z - lsez                           # LogSoftmax over C
    ls_ref[...] = log_score[None]
    fs_ref[...] = jnp.exp(log_score)[None]         # fused_score (EUP, in-kernel)


def sample_net_pallas(x_flat, w_samples, w1_eff, b1_eff, w2):
    """x_flat: (N,C_in,P); w_samples: (S,C,C_in) -> dict of 12 (N,C,P) arrays."""
    N, Cin, P = x_flat.shape
    S, C, _ = w_samples.shape
    K, M = w1_eff.shape

    out_shapes = tuple(jax.ShapeDtypeStruct((N, C, P), jnp.float32)
                       for _ in OUT_NAMES)
    out_specs = tuple(pl.BlockSpec((1, C, P), lambda n: (n, 0, 0))
                      for _ in OUT_NAMES)

    outs = pl.pallas_call(
        _fused_kernel,
        out_shape=out_shapes,
        grid_spec=pltpu.PrefetchScalarGridSpec(
            num_scalar_prefetch=0,
            grid=(N,),
            in_specs=[
                pl.BlockSpec((1, Cin, P), lambda n: (n, 0, 0)),   # x (per batch)
                pl.BlockSpec((S, C, Cin), lambda n: (0, 0, 0)),   # weight samples
                pl.BlockSpec((K, M), lambda n: (0, 0)),           # BN-folded w1
                pl.BlockSpec((K, 1), lambda n: (0, 0)),           # BN-folded bias
                pl.BlockSpec((K, 1), lambda n: (0, 0)),           # w2
            ],
            out_specs=out_specs,
        ),
        compiler_params=pltpu.CompilerParams(
            dimension_semantics=("parallel",)),                   # shards on v7x 2TC
    )(x_flat, w_samples, w1_eff, b1_eff, w2)
    return dict(zip(OUT_NAMES, outs))


# ---------------------------------------------------------------------------
# SampleNet forward (eval mode, fuse_metrics set, nbr_f_samples >= 2)
def sample_net_forward(x, params):
    N, Cin, H_, W_ = x.shape
    P = H_ * W_
    x_flat = x.reshape(N, Cin, P).astype(jnp.float32)

    # Bayesian weight samples: W_s = mu + exp(log_sigma) * eps_s
    w_samples = (params['w_mean'][None]
                 + jnp.exp(params['w_log_sigma'])[None] * params['eps'])

    # Fold BatchNorm(eval, eps=1e-5) into the first 1x1 conv of MetricRegression.
    a = params['bn_gamma'] * jax.lax.rsqrt(params['bn_rv'] + jnp.float32(1e-5))
    w1_eff = a * params['w1']                          # (K, M)
    b1_eff = params['bn_beta'] - a * params['bn_rm']   # (K, 1)

    result = sample_net_pallas(x_flat, w_samples, w1_eff, b1_eff, params['w2'])
    C = result['mean_score'].shape[1]

    # kl from the BNN (closed-form Gaussian KL vs N(0,1)); plain-JAX scalar glue.
    mu, lsig = params['w_mean'], params['w_log_sigma']
    result['kl'] = 0.5 * jnp.sum(jnp.exp(2.0 * lsig) + mu * mu - 1.0 - 2.0 * lsig)

    # reshape spatial dims back to NCHW for the returned dict
    out = {}
    for k, v in result.items():
        out[k] = v if k == 'kl' else v.reshape(N, C, H_, W_)
    return out


# ---------------------------------------------------------------------------
# Pure-JAX reference (same math, no Pallas) for correctness checking.
def sample_net_reference(x, params):
    w = (params['w_mean'][None]
         + jnp.exp(params['w_log_sigma'])[None] * params['eps'])        # (S,C,Cin)
    logits = jnp.einsum('sci,nihw->snchw', w, x)                        # (S,N,C,H,W)
    ls = jax.nn.log_softmax(logits, axis=2)
    p = jnp.exp(ls)
    S = p.shape[0]
    mean = p.sum(axis=0) / S
    ent = -(p * ls).sum(axis=0) / S
    va = (p - p * p).sum(axis=0) / S
    ve = ((p - mean[None]) ** 2).sum(axis=0) / S
    var = va + ve
    eps = 1e-10
    res = dict(mean_score=mean, entropy=ent, var_aleatoric=va, var_epistemic=ve,
               var=var,
               snr=mean / (var + eps),
               dispersion=var / (mean + eps),
               coef_var=jnp.sqrt(var + eps) / (mean + eps),
               rel_entropy=ent / (mean + eps),
               rel_entropy_inv=mean / (ent + eps))
    a = params['bn_gamma'] * jax.lax.rsqrt(params['bn_rv'] + jnp.float32(1e-5))
    w1_eff = a * params['w1']
    b1_eff = (params['bn_beta'] - a * params['bn_rm'])[:, 0]            # (K,)
    metric_cat = jnp.stack([res[m] for m in METRICS], axis=2)           # (N,C,M,H,W)
    h = jnp.einsum('km,ncmhw->nckhw', w1_eff, metric_cat)
    h = jnp.maximum(h + b1_eff[None, None, :, None, None], 0.0)
    z = jnp.einsum('k,nckhw->nchw', params['w2'][:, 0], h)
    log_score = jax.nn.log_softmax(z, axis=1)
    res['log_score'] = log_score
    res['fused_score'] = jnp.exp(log_score)
    mu, lsig = params['w_mean'], params['w_log_sigma']
    res['kl'] = 0.5 * jnp.sum(jnp.exp(2.0 * lsig) + mu * mu - 1.0 - 2.0 * lsig)
    return res


# ---------------------------------------------------------------------------
if __name__ == "__main__":
    key = jax.random.PRNGKey(0)
    keys = jax.random.split(key, 10)

    x = jax.random.normal(keys[0], (N_BATCH, C_IN, H, W), jnp.float32)

    params = {
        # synthetic Bayesian 1x1-conv classifier (C_in -> C_cls)
        'w_mean':      0.5 * jax.random.normal(keys[1], (C_CLS, C_IN), jnp.float32),
        'w_log_sigma': -2.0 + 0.1 * jax.random.normal(keys[2], (C_CLS, C_IN), jnp.float32),
        'eps':         jax.random.normal(keys[3], (S_SAMPLES, C_CLS, C_IN), jnp.float32),
        # MetricRegression: ConvBlock(M -> 2M) weights + BN stats, Conv(2M -> 1)
        'w1':       0.3 * jax.random.normal(keys[4], (K_HID, M_METRICS), jnp.float32),
        'bn_gamma': 1.0 + 0.1 * jax.random.normal(keys[5], (K_HID, 1), jnp.float32),
        'bn_beta':  0.05 * jax.random.normal(keys[6], (K_HID, 1), jnp.float32),
        'bn_rm':    0.1 * jax.random.normal(keys[7], (K_HID, 1), jnp.float32),
        'bn_rv':    jax.random.uniform(keys[8], (K_HID, 1), jnp.float32, 0.5, 1.5),
        'w2':       0.3 * jax.random.normal(keys[9], (K_HID, 1), jnp.float32),
    }

    out = jax.jit(sample_net_forward)(x, params)
    for leaf in jax.tree_util.tree_leaves(out):
        jax.block_until_ready(leaf)

    # shape / validity sanity checks
    assert out['log_score'].shape == (N_BATCH, C_CLS, H, W)
    assert out['mean_score'].shape == (N_BATCH, C_CLS, H, W)
    assert out['var'].shape == (N_BATCH, C_CLS, H, W)
    col_sum = out['fused_score'].sum(axis=1)
    assert jnp.allclose(col_sum, 1.0, atol=1e-4), "fused_score not normalized over C"
    assert bool(jnp.all(jnp.isfinite(out['log_score'])))

    # numeric check against the pure-JAX reference
    ref = jax.jit(sample_net_reference)(x, params)
    for name in OUT_NAMES + ('kl',):
        got, want = out[name], ref[name]
        assert got.shape == want.shape, name
        assert jnp.allclose(got, want, atol=2e-3, rtol=2e-3), \
            f"mismatch in {name}: max abs err {jnp.max(jnp.abs(got - want))}"

    print("KERNEL_OK")
</pallas_src>

<mosaic_0001>
module attributes {stable_mosaic.version = 11 : i64} {
  func.func @_fused_kernel(%arg0: i32, %arg1: memref<1x3x256xf32, #tpu.memory_space<vmem>>, %arg2: memref<4x4x3xf32, #tpu.memory_space<vmem>>, %arg3: memref<10x5xf32, #tpu.memory_space<vmem>>, %arg4: memref<10x1xf32, #tpu.memory_space<vmem>>, %arg5: memref<10x1xf32, #tpu.memory_space<vmem>>, %arg6: memref<1x4x256xf32, #tpu.memory_space<vmem>>, %arg7: memref<1x4x256xf32, #tpu.memory_space<vmem>>, %arg8: memref<1x4x256xf32, #tpu.memory_space<vmem>>, %arg9: memref<1x4x256xf32, #tpu.memory_space<vmem>>, %arg10: memref<1x4x256xf32, #tpu.memory_space<vmem>>, %arg11: memref<1x4x256xf32, #tpu.memory_space<vmem>>, %arg12: memref<1x4x256xf32, #tpu.memory_space<vmem>>, %arg13: memref<1x4x256xf32, #tpu.memory_space<vmem>>, %arg14: memref<1x4x256xf32, #tpu.memory_space<vmem>>, %arg15: memref<1x4x256xf32, #tpu.memory_space<vmem>>, %arg16: memref<1x4x256xf32, #tpu.memory_space<vmem>>, %arg17: memref<1x4x256xf32, #tpu.memory_space<vmem>>) attributes {dimension_semantics = [#tpu.dimension_semantics<parallel>], iteration_bounds = array<i64: 2>, scalar_prefetch = 0 : i64, scratch_operands = 0 : i64, tpu.core_type = #tpu.core_type<tc>, window_params = [{transform_indices = @transform_0, window_bounds = array<i64: 1, 3, 256>}, {pipeline_mode = #tpu.pipeline_mode<synchronous>, transform_indices = @transform_1, window_bounds = array<i64: 4, 4, 3>}, {pipeline_mode = #tpu.pipeline_mode<synchronous>, transform_indices = @transform_2, window_bounds = array<i64: 10, 5>}, {pipeline_mode = #tpu.pipeline_mode<synchronous>, transform_indices = @transform_3, window_bounds = array<i64: 10, 1>}, {pipeline_mode = #tpu.pipeline_mode<synchronous>, transform_indices = @transform_4, window_bounds = array<i64: 10, 1>}, {transform_indices = @transform_5, window_bounds = array<i64: 1, 4, 256>}, {transform_indices = @transform_6, window_bounds = array<i64: 1, 4, 256>}, {transform_indices = @transform_7, window_bounds = array<i64: 1, 4, 256>}, {transform_indices = @transform_8, window_bounds = array<i64: 1, 4, 256>}, {transform_indices = @transform_9, window_bounds = array<i64: 1, 4, 256>}, {transform_indices = @transform_10, window_bounds = array<i64: 1, 4, 256>}, {transform_indices = @transform_11, window_bounds = array<i64: 1, 4, 256>}, {transform_indices = @transform_12, window_bounds = array<i64: 1, 4, 256>}, {transform_indices = @transform_13, window_bounds = array<i64: 1, 4, 256>}, {transform_indices = @transform_14, window_bounds = array<i64: 1, 4, 256>}, {transform_indices = @transform_15, window_bounds = array<i64: 1, 4, 256>}, {transform_indices = @transform_16, window_bounds = array<i64: 1, 4, 256>}]} {
    %c0 = arith.constant 0 : index
    %c0_0 = arith.constant 0 : index
    %c0_1 = arith.constant 0 : index
    %0 = vector.load %arg1[%c0, %c0_0, %c0_1] : memref<1x3x256xf32, #tpu.memory_space<vmem>>, vector<1x3x256xf32>
    %1 = vector.shape_cast %0 : vector<1x3x256xf32> to vector<3x256xf32>
    %c0_2 = arith.constant 0 : index
    %c0_3 = arith.constant 0 : index
    %c0_4 = arith.constant 0 : index
    %2 = vector.load %arg2[%c0_2, %c0_3, %c0_4] : memref<4x4x3xf32, #tpu.memory_space<vmem>>, vector<4x4x3xf32>
    %3 = vector.extract_strided_slice %2 {offsets = [0, 0, 0], sizes = [4, 4, 1], strides = [1, 1, 1]} : vector<4x4x3xf32> to vector<4x4x1xf32>
    %4 = vector.extract_strided_slice %1 {offsets = [0, 0], sizes = [1, 256], strides = [1, 1]} : vector<3x256xf32> to vector<1x256xf32>
    %5 = vector.shape_cast %4 : vector<1x256xf32> to vector<1x1x256xf32>
    %6 = vector.broadcast %3 : vector<4x4x1xf32> to vector<4x4x256xf32>
    %7 = vector.broadcast %5 : vector<1x1x256xf32> to vector<4x4x256xf32>
    %8 = arith.mulf %6, %7 : vector<4x4x256xf32>
    %9 = vector.extract_strided_slice %2 {offsets = [0, 0, 1], sizes = [4, 4, 1], strides = [1, 1, 1]} : vector<4x4x3xf32> to vector<4x4x1xf32>
    %10 = vector.extract_strided_slice %1 {offsets = [1, 0], sizes = [1, 256], strides = [1, 1]} : vector<3x256xf32> to vector<1x256xf32>
    %11 = vector.shape_cast %10 : vector<1x256xf32> to vector<1x1x256xf32>
    %12 = vector.broadcast %9 : vector<4x4x1xf32> to vector<4x4x256xf32>
    %13 = vector.broadcast %11 : vector<1x1x256xf32> to vector<4x4x256xf32>
    %14 = arith.mulf %12, %13 : vector<4x4x256xf32>
    %15 = arith.addf %8, %14 : vector<4x4x256xf32>
    %16 = vector.extract_strided_slice %2 {offsets = [0, 0, 2], sizes = [4, 4, 1], strides = [1, 1, 1]} : vector<4x4x3xf32> to vector<4x4x1xf32>
    %17 = vector.extract_strided_slice %1 {offsets = [2, 0], sizes = [1, 256], strides = [1, 1]} : vector<3x256xf32> to vector<1x256xf32>
    %18 = vector.shape_cast %17 : vector<1x256xf32> to vector<1x1x256xf32>
    %19 = vector.broadcast %16 : vector<4x4x1xf32> to vector<4x4x256xf32>
    %20 = vector.broadcast %18 : vector<1x1x256xf32> to vector<4x4x256xf32>
    %21 = arith.mulf %19, %20 : vector<4x4x256xf32>
    %22 = arith.addf %15, %21 : vector<4x4x256xf32>
    %cst = arith.constant dense<0xFF800000> : vector<4x256xf32>
    %23 = vector.multi_reduction <maximumf>, %22, %cst [1] : vector<4x4x256xf32> to vector<4x256xf32>
    %24 = vector.shape_cast %23 : vector<4x256xf32> to vector<4x1x256xf32>
    %25 = vector.broadcast %24 : vector<4x1x256xf32> to vector<4x4x256xf32>
    %26 = arith.subf %22, %25 : vector<4x4x256xf32>
    %27 = math.exp %26 : vector<4x4x256xf32>
    %cst_5 = arith.constant dense<0.000000e+00> : vector<4x256xf32>
    %28 = vector.multi_reduction <add>, %27, %cst_5 [1] : vector<4x4x256xf32> to vector<4x256xf32>
    %29 = vector.shape_cast %28 : vector<4x256xf32> to vector<4x1x256xf32>
    %30 = math.log %29 : vector<4x1x256xf32>
    %31 = arith.addf %30, %24 : vector<4x1x256xf32>
    %32 = vector.broadcast %31 : vector<4x1x256xf32> to vector<4x4x256xf32>
    %33 = arith.subf %22, %32 : vector<4x4x256xf32>
    %34 = math.exp %33 : vector<4x4x256xf32>
    %cst_6 = arith.constant dense<0.000000e+00> : vector<4x256xf32>
    %35 = vector.multi_reduction <add>, %34, %cst_6 [0] : vector<4x4x256xf32> to vector<4x256xf32>
    %cst_7 = arith.constant 2.500000e-01 : f32
    %36 = vector.broadcast %cst_7 : f32 to vector<4x256xf32>
    %37 = arith.mulf %35, %36 : vector<4x256xf32>
    %38 = arith.mulf %34, %33 : vector<4x4x256xf32>
    %cst_8 = arith.constant dense<0.000000e+00> : vector<4x256xf32>
    %39 = vector.multi_reduction <add>, %38, %cst_8 [0] : vector<4x4x256xf32> to vector<4x256xf32>
    %cst_9 = arith.constant 0.000000e+00 : f32
    %40 = vector.broadcast %cst_9 : f32 to vector<4x256xf32>
    %41 = arith.subf %40, %39 : vector<4x256xf32>
    %cst_10 = arith.constant 2.500000e-01 : f32
    %42 = vector.broadcast %cst_10 : f32 to vector<4x256xf32>
    %43 = arith.mulf %41, %42 : vector<4x256xf32>
    %44 = arith.mulf %34, %34 : vector<4x4x256xf32>
    %45 = arith.subf %34, %44 : vector<4x4x256xf32>
    %cst_11 = arith.constant dense<0.000000e+00> : vector<4x256xf32>
    %46 = vector.multi_reduction <add>, %45, %cst_11 [0] : vector<4x4x256xf32> to vector<4x256xf32>
    %cst_12 = arith.constant 2.500000e-01 : f32
    %47 = vector.broadcast %cst_12 : f32 to vector<4x256xf32>
    %48 = arith.mulf %46, %47 : vector<4x256xf32>
    %49 = vector.shape_cast %37 : vector<4x256xf32> to vector<1x4x256xf32>
    %50 = vector.broadcast %49 : vector<1x4x256xf32> to vector<4x4x256xf32>
    %51 = arith.subf %34, %50 : vector<4x4x256xf32>
    %52 = arith.mulf %51, %51 : vector<4x4x256xf32>
    %cst_13 = arith.constant dense<0.000000e+00> : vector<4x256xf32>
    %53 = vector.multi_reduction <add>, %52, %cst_13 [0] : vector<4x4x256xf32> to vector<4x256xf32>
    %cst_14 = arith.constant 2.500000e-01 : f32
    %54 = vector.broadcast %cst_14 : f32 to vector<4x256xf32>
    %55 = arith.mulf %53, %54 : vector<4x256xf32>
    %56 = arith.addf %48, %55 : vector<4x256xf32>
    %cst_15 = arith.constant 1.000000e-10 : f32
    %57 = vector.broadcast %cst_15 : f32 to vector<4x256xf32>
    %58 = arith.addf %56, %57 : vector<4x256xf32>
    %59 = arith.divf %37, %58 : vector<4x256xf32>
    %cst_16 = arith.constant 1.000000e-10 : f32
    %60 = vector.broadcast %cst_16 : f32 to vector<4x256xf32>
    %61 = arith.addf %37, %60 : vector<4x256xf32>
    %62 = arith.divf %56, %61 : vector<4x256xf32>
    %cst_17 = arith.constant 1.000000e-10 : f32
    %63 = vector.broadcast %cst_17 : f32 to vector<4x256xf32>
    %64 = arith.addf %56, %63 : vector<4x256xf32>
    %65 = math.sqrt %64 : vector<4x256xf32>
    %cst_18 = arith.constant 1.000000e-10 : f32
    %66 = vector.broadcast %cst_18 : f32 to vector<4x256xf32>
    %67 = arith.addf %37, %66 : vector<4x256xf32>
    %68 = arith.divf %65, %67 : vector<4x256xf32>
    %cst_19 = arith.constant 1.000000e-10 : f32
    %69 = vector.broadcast %cst_19 : f32 to vector<4x256xf32>
    %70 = arith.addf %37, %69 : vector<4x256xf32>
    %71 = arith.divf %43, %70 : vector<4x256xf32>
    %cst_20 = arith.constant 1.000000e-10 : f32
    %72 = vector.broadcast %cst_20 : f32 to vector<4x256xf32>
    %73 = arith.addf %43, %72 : vector<4x256xf32>
    %74 = arith.divf %37, %73 : vector<4x256xf32>
    %75 = vector.shape_cast %37 : vector<4x256xf32> to vector<1x4x256xf32>
    %c0_21 = arith.constant 0 : index
    %c0_22 = arith.constant 0 : index
    %c0_23 = arith.constant 0 : index
    %76 = vector.load %arg6[%c0_21, %c0_22, %c0_23] : memref<1x4x256xf32, #tpu.memory_space<vmem>>, vector<1x4x256xf32>
    tpu.vector_store %arg6[%c0_21, %c0_22, %c0_23], %75 {strides = array<i32>} : memref<1x4x256xf32, #tpu.memory_space<vmem>>, vector<1x4x256xf32>,
    %77 = vector.shape_cast %43 : vector<4x256xf32> to vector<1x4x256xf32>
    %c0_24 = arith.constant 0 : index
    %c0_25 = arith.constant 0 : index
    %c0_26 = arith.constant 0 : index
    %78 = vector.load %arg7[%c0_24, %c0_25, %c0_26] : memref<1x4x256xf32, #tpu.memory_space<vmem>>, vector<1x4x256xf32>
    tpu.vector_store %arg7[%c0_24, %c0_25, %c0_26], %77 {strides = array<i32>} : memref<1x4x256xf32, #tpu.memory_space<vmem>>, vector<1x4x256xf32>,
    %79 = vector.shape_cast %48 : vector<4x256xf32> to vector<1x4x256xf32>
    %c0_27 = arith.constant 0 : index
    %c0_28 = arith.constant 0 : index
    %c0_29 = arith.constant 0 : index
    %80 = vector.load %arg8[%c0_27, %c0_28, %c0_29] : memref<1x4x256xf32, #tpu.memory_space<vmem>>, vector<1x4x256xf32>
    tpu.vector_store %arg8[%c0_27, %c0_28, %c0_29], %79 {strides = array<i32>} : memref<1x4x256xf32, #tpu.memory_space<vmem>>, vector<1x4x256xf32>,
    %81 = vector.shape_cast %55 : vector<4x256xf32> to vector<1x4x256xf32>
    %c0_30 = arith.constant 0 : index
    %c0_31 = arith.constant 0 : index
    %c0_32 = arith.constant 0 : index
    %82 = vector.load %arg9[%c0_30, %c0_31, %c0_32] : memref<1x4x256xf32, #tpu.memory_space<vmem>>, vector<1x4x256xf32>
    tpu.vector_store %arg9[%c0_30, %c0_31, %c0_32], %81 {strides = array<i32>} : memref<1x4x256xf32, #tpu.memory_space<vmem>>, vector<1x4x256xf32>,
    %83 = vector.shape_cast %56 : vector<4x256xf32> to vector<1x4x256xf32>
    %c0_33 = arith.constant 0 : index
    %c0_34 = arith.constant 0 : index
    %c0_35 = arith.constant 0 : index
    %84 = vector.load %arg10[%c0_33, %c0_34, %c0_35] : memref<1x4x256xf32, #tpu.memory_space<vmem>>, vector<1x4x256xf32>
    tpu.vector_store %arg10[%c0_33, %c0_34, %c0_35], %83 {strides = array<i32>} : memref<1x4x256xf32, #tpu.memory_space<vmem>>, vector<1x4x256xf32>,
    %85 = vector.shape_cast %59 : vector<4x256xf32> to vector<1x4x256xf32>
    %c0_36 = arith.constant 0 : index
    %c0_37 = arith.constant 0 : index
    %c0_38 = arith.constant 0 : index
    %86 = vector.load %arg11[%c0_36, %c0_37, %c0_38] : memref<1x4x256xf32, #tpu.memory_space<vmem>>, vector<1x4x256xf32>
    tpu.vector_store %arg11[%c0_36, %c0_37, %c0_38], %85 {strides = array<i32>} : memref<1x4x256xf32, #tpu.memory_space<vmem>>, vector<1x4x256xf32>,
    %87 = vector.shape_cast %62 : vector<4x256xf32> to vector<1x4x256xf32>
    %c0_39 = arith.constant 0 : index
    %c0_40 = arith.constant 0 : index
    %c0_41 = arith.constant 0 : index
    %88 = vector.load %arg12[%c0_39, %c0_40, %c0_41] : memref<1x4x256xf32, #tpu.memory_space<vmem>>, vector<1x4x256xf32>
    tpu.vector_store %arg12[%c0_39, %c0_40, %c0_41], %87 {strides = array<i32>} : memref<1x4x256xf32, #tpu.memory_space<vmem>>, vector<1x4x256xf32>,
    %89 = vector.shape_cast %68 : vector<4x256xf32> to vector<1x4x256xf32>
    %c0_42 = arith.constant 0 : index
    %c0_43 = arith.constant 0 : index
    %c0_44 = arith.constant 0 : index
    %90 = vector.load %arg13[%c0_42, %c0_43, %c0_44] : memref<1x4x256xf32, #tpu.memory_space<vmem>>, vector<1x4x256xf32>
    tpu.vector_store %arg13[%c0_42, %c0_43, %c0_44], %89 {strides = array<i32>} : memref<1x4x256xf32, #tpu.memory_space<vmem>>, vector<1x4x256xf32>,
    %91 = vector.shape_cast %71 : vector<4x256xf32> to vector<1x4x256xf32>
    %c0_45 = arith.constant 0 : index
    %c0_46 = arith.constant 0 : index
    %c0_47 = arith.constant 0 : index
    %92 = vector.load %arg14[%c0_45, %c0_46, %c0_47] : memref<1x4x256xf32, #tpu.memory_space<vmem>>, vector<1x4x256xf32>
    tpu.vector_store %arg14[%c0_45, %c0_46, %c0_47], %91 {strides = array<i32>} : memref<1x4x256xf32, #tpu.memory_space<vmem>>, vector<1x4x256xf32>,
    %93 = vector.shape_cast %74 : vector<4x256xf32> to vector<1x4x256xf32>
    %c0_48 = arith.constant 0 : index
    %c0_49 = arith.constant 0 : index
    %c0_50 = arith.constant 0 : index
    %94 = vector.load %arg15[%c0_48, %c0_49, %c0_50] : memref<1x4x256xf32, #tpu.memory_space<vmem>>, vector<1x4x256xf32>
    tpu.vector_store %arg15[%c0_48, %c0_49, %c0_50], %93 {strides = array<i32>} : memref<1x4x256xf32, #tpu.memory_space<vmem>>, vector<1x4x256xf32>,
    %c0_51 = arith.constant 0 : index
    %c0_52 = arith.constant 0 : index
    %95 = vector.load %arg3[%c0_51, %c0_52] : memref<10x5xf32, #tpu.memory_space<vmem>>, vector<10x5xf32>
    %c0_53 = arith.constant 0 : index
    %c0_54 = arith.constant 0 : index
    %96 = vector.load %arg4[%c0_53, %c0_54] : memref<10x1xf32, #tpu.memory_space<vmem>>, vector<10x1xf32>
    %c0_55 = arith.constant 0 : index
    %c0_56 = arith.constant 0 : index
    %97 = vector.load %arg5[%c0_55, %c0_56] : memref<10x1xf32, #tpu.memory_space<vmem>>, vector<10x1xf32>
    %98 = vector.extract_strided_slice %95 {offsets = [0, 0], sizes = [10, 1], strides = [1, 1]} : vector<10x5xf32> to vector<10x1xf32>
    %99 = vector.shape_cast %98 : vector<10x1xf32> to vector<10x1x1xf32>
    %100 = vector.shape_cast %68 : vector<4x256xf32> to vector<1x4x256xf32>
    %101 = vector.broadcast %99 : vector<10x1x1xf32> to vector<10x4x256xf32>
    %102 = vector.broadcast %100 : vector<1x4x256xf32> to vector<10x4x256xf32>
    %103 = arith.mulf %101, %102 : vector<10x4x256xf32>
    %104 = vector.extract_strided_slice %95 {offsets = [0, 1], sizes = [10, 1], strides = [1, 1]} : vector<10x5xf32> to vector<10x1xf32>
    %105 = vector.shape_cast %104 : vector<10x1xf32> to vector<10x1x1xf32>
    %106 = vector.shape_cast %43 : vector<4x256xf32> to vector<1x4x256xf32>
    %107 = vector.broadcast %105 : vector<10x1x1xf32> to vector<10x4x256xf32>
    %108 = vector.broadcast %106 : vector<1x4x256xf32> to vector<10x4x256xf32>
    %109 = arith.mulf %107, %108 : vector<10x4x256xf32>
    %110 = arith.addf %103, %109 : vector<10x4x256xf32>
    %111 = vector.extract_strided_slice %95 {offsets = [0, 2], sizes = [10, 1], strides = [1, 1]} : vector<10x5xf32> to vector<10x1xf32>
    %112 = vector.shape_cast %111 : vector<10x1xf32> to vector<10x1x1xf32>
    %113 = vector.shape_cast %37 : vector<4x256xf32> to vector<1x4x256xf32>
    %114 = vector.broadcast %112 : vector<10x1x1xf32> to vector<10x4x256xf32>
    %115 = vector.broadcast %113 : vector<1x4x256xf32> to vector<10x4x256xf32>
    %116 = arith.mulf %114, %115 : vector<10x4x256xf32>
    %117 = arith.addf %110, %116 : vector<10x4x256xf32>
    %118 = vector.extract_strided_slice %95 {offsets = [0, 3], sizes = [10, 1], strides = [1, 1]} : vector<10x5xf32> to vector<10x1xf32>
    %119 = vector.shape_cast %118 : vector<10x1xf32> to vector<10x1x1xf32>
    %120 = vector.shape_cast %59 : vector<4x256xf32> to vector<1x4x256xf32>
    %121 = vector.broadcast %119 : vector<10x1x1xf32> to vector<10x4x256xf32>
    %122 = vector.broadcast %120 : vector<1x4x256xf32> to vector<10x4x256xf32>
    %123 = arith.mulf %121, %122 : vector<10x4x256xf32>
    %124 = arith.addf %117, %123 : vector<10x4x256xf32>
    %125 = vector.extract_strided_slice %95 {offsets = [0, 4], sizes = [10, 1], strides = [1, 1]} : vector<10x5xf32> to vector<10x1xf32>
    %126 = vector.shape_cast %125 : vector<10x1xf32> to vector<10x1x1xf32>
    %127 = vector.shape_cast %56 : vector<4x256xf32> to vector<1x4x256xf32>
    %128 = vector.broadcast %126 : vector<10x1x1xf32> to vector<10x4x256xf32>
    %129 = vector.broadcast %127 : vector<1x4x256xf32> to vector<10x4x256xf32>
    %130 = arith.mulf %128, %129 : vector<10x4x256xf32>
    %131 = arith.addf %124, %130 : vector<10x4x256xf32>
    %132 = vector.shape_cast %96 : vector<10x1xf32> to vector<10x1x1xf32>
    %133 = vector.broadcast %132 : vector<10x1x1xf32> to vector<10x4x256xf32>
    %134 = arith.addf %131, %133 : vector<10x4x256xf32>
    %cst_57 = arith.constant 0.000000e+00 : f32
    %135 = vector.broadcast %cst_57 : f32 to vector<10x4x256xf32>
    %136 = arith.maximumf %134, %135 : vector<10x4x256xf32>
    %137 = vector.shape_cast %97 : vector<10x1xf32> to vector<10x1x1xf32>
    %138 = vector.broadcast %137 : vector<10x1x1xf32> to vector<10x4x256xf32>
    %139 = arith.mulf %138, %136 : vector<10x4x256xf32>
    %cst_58 = arith.constant dense<0.000000e+00> : vector<4x256xf32>
    %140 = vector.multi_reduction <add>, %139, %cst_58 [0] : vector<10x4x256xf32> to vector<4x256xf32>
    %cst_59 = arith.constant dense<0xFF800000> : vector<256xf32>
    %141 = vector.multi_reduction <maximumf>, %140, %cst_59 [0] : vector<4x256xf32> to vector<256xf32>
    %142 = vector.shape_cast %141 : vector<256xf32> to vector<1x256xf32>
    %143 = vector.broadcast %142 : vector<1x256xf32> to vector<4x256xf32>
    %144 = arith.subf %140, %143 : vector<4x256xf32>
    %145 = math.exp %144 : vector<4x256xf32>
    %cst_60 = arith.constant dense<0.000000e+00> : vector<256xf32>
    %146 = vector.multi_reduction <add>, %145, %cst_60 [0] : vector<4x256xf32> to vector<256xf32>
    %147 = vector.shape_cast %146 : vector<256xf32> to vector<1x256xf32>
    %148 = math.log %147 : vector<1x256xf32>
    %149 = arith.addf %148, %142 : vector<1x256xf32>
    %150 = vector.broadcast %149 : vector<1x256xf32> to vector<4x256xf32>
    %151 = arith.subf %140, %150 : vector<4x256xf32>
    %152 = vector.shape_cast %151 : vector<4x256xf32> to vector<1x4x256xf32>
    %c0_61 = arith.constant 0 : index
    %c0_62 = arith.constant 0 : index
    %c0_63 = arith.constant 0 : index
    %153 = vector.load %arg16[%c0_61, %c0_62, %c0_63] : memref<1x4x256xf32, #tpu.memory_space<vmem>>, vector<1x4x256xf32>
    tpu.vector_store %arg16[%c0_61, %c0_62, %c0_63], %152 {strides = array<i32>} : memref<1x4x256xf32, #tpu.memory_space<vmem>>, vector<1x4x256xf32>,
    %154 = math.exp %151 : vector<4x256xf32>
    %155 = vector.shape_cast %154 : vector<4x256xf32> to vector<1x4x256xf32>
    %c0_64 = arith.constant 0 : index
    %c0_65 = arith.constant 0 : index
    %c0_66 = arith.constant 0 : index
    %156 = vector.load %arg17[%c0_64, %c0_65, %c0_66] : memref<1x4x256xf32, #tpu.memory_space<vmem>>, vector<1x4x256xf32>
    tpu.vector_store %arg17[%c0_64, %c0_65, %c0_66], %155 {strides = array<i32>} : memref<1x4x256xf32, #tpu.memory_space<vmem>>, vector<1x4x256xf32>,
    return
  }
  func.func @transform_0(%arg0: i32) -> (i32, i32, i32) {
    %c0_i32 = arith.constant 0 : i32
    %c0_i32_0 = arith.constant 0 : i32
    %c0_i32_1 = arith.constant 0 : i32
    return %arg0, %c0_i32, %c0_i32_0 : i32, i32, i32
  }
  func.func @transform_1(%arg0: i32) -> (i32, i32, i32) {
    %c0_i32 = arith.constant 0 : i32
    %c0_i32_0 = arith.constant 0 : i32
    %c0_i32_1 = arith.constant 0 : i32
    %c0_i32_2 = arith.constant 0 : i32
    return %c0_i32, %c0_i32_0, %c0_i32_1 : i32, i32, i32
  }
  func.func @transform_2(%arg0: i32) -> (i32, i32) {
    %c0_i32 = arith.constant 0 : i32
    %c0_i32_0 = arith.constant 0 : i32
    %c0_i32_1 = arith.constant 0 : i32
    return %c0_i32, %c0_i32_0 : i32, i32
  }
  func.func @transform_3(%arg0: i32) -> (i32, i32) {
    %c0_i32 = arith.constant 0 : i32
    %c0_i32_0 = arith.constant 0 : i32
    %c0_i32_1 = arith.constant 0 : i32
    return %c0_i32, %c0_i32_0 : i32, i32
  }
  func.func @transform_4(%arg0: i32) -> (i32, i32) {
    %c0_i32 = arith.constant 0 : i32
    %c0_i32_0 = arith.constant 0 : i32
    %c0_i32_1 = arith.constant 0 : i32
    return %c0_i32, %c0_i32_0 : i32, i32
  }
  func.func @transform_5(%arg0: i32) -> (i32, i32, i32) {
    %c0_i32 = arith.constant 0 : i32
    %c0_i32_0 = arith.constant 0 : i32
    %c0_i32_1 = arith.constant 0 : i32
    return %arg0, %c0_i32, %c0_i32_0 : i32, i32, i32
  }
  func.func @transform_6(%arg0: i32) -> (i32, i32, i32) {
    %c0_i32 = arith.constant 0 : i32
    %c0_i32_0 = arith.constant 0 : i32
    %c0_i32_1 = arith.constant 0 : i32
    return %arg0, %c0_i32, %c0_i32_0 : i32, i32, i32
  }
  func.func @transform_7(%arg0: i32) -> (i32, i32, i32) {
    %c0_i32 = arith.constant 0 : i32
    %c0_i32_0 = arith.constant 0 : i32
    %c0_i32_1 = arith.constant 0 : i32
    return %arg0, %c0_i32, %c0_i32_0 : i32, i32, i32
  }
  func.func @transform_8(%arg0: i32) -> (i32, i32, i32) {
    %c0_i32 = arith.constant 0 : i32
    %c0_i32_0 = arith.constant 0 : i32
    %c0_i32_1 = arith.constant 0 : i32
    return %arg0, %c0_i32, %c0_i32_0 : i32, i32, i32
  }
  func.func @transform_9(%arg0: i32) -> (i32, i32, i32) {
    %c0_i32 = arith.constant 0 : i32
    %c0_i32_0 = arith.constant 0 : i32
    %c0_i32_1 = arith.constant 0 : i32
    return %arg0, %c0_i32, %c0_i32_0 : i32, i32, i32
  }
  func.func @transform_10(%arg0: i32) -> (i32, i32, i32) {
    %c0_i32 = arith.constant 0 : i32
    %c0_i32_0 = arith.constant 0 : i32
    %c0_i32_1 = arith.constant 0 : i32
    return %arg0, %c0_i32, %c0_i32_0 : i32, i32, i32
  }
  func.func @transform_11(%arg0: i32) -> (i32, i32, i32) {
    %c0_i32 = arith.constant 0 : i32
    %c0_i32_0 = arith.constant 0 : i32
    %c0_i32_1 = arith.constant 0 : i32
    return %arg0, %c0_i32, %c0_i32_0 : i32, i32, i32
  }
  func.func @transform_12(%arg0: i32) -> (i32, i32, i32) {
    %c0_i32 = arith.constant 0 : i32
    %c0_i32_0 = arith.constant 0 : i32
    %c0_i32_1 = arith.constant 0 : i32
    return %arg0, %c0_i32, %c0_i32_0 : i32, i32, i32
  }
  func.func @transform_13(%arg0: i32) -> (i32, i32, i32) {
    %c0_i32 = arith.constant 0 : i32
    %c0_i32_0 = arith.constant 0 : i32
    %c0_i32_1 = arith.constant 0 : i32
    return %arg0, %c0_i32, %c0_i32_0 : i32, i32, i32
  }
  func.func @transform_14(%arg0: i32) -> (i32, i32, i32) {
    %c0_i32 = arith.constant 0 : i32
    %c0_i32_0 = arith.constant 0 : i32
    %c0_i32_1 = arith.constant 0 : i32
    return %arg0, %c0_i32, %c0_i32_0 : i32, i32, i32
  }
  func.func @transform_15(%arg0: i32) -> (i32, i32, i32) {
    %c0_i32 = arith.constant 0 : i32
    %c0_i32_0 = arith.constant 0 : i32
    %c0_i32_1 = arith.constant 0 : i32
    return %arg0, %c0_i32, %c0_i32_0 : i32, i32, i32
  }
  func.func @transform_16(%arg0: i32) -> (i32, i32, i32) {
    %c0_i32 = arith.constant 0 : i32
    %c0_i32_0 = arith.constant 0 : i32
    %c0_i32_1 = arith.constant 0 : i32
    return %arg0, %c0_i32, %c0_i32_0 : i32, i32, i32
  }
}

</mosaic_0001>

<llo_original>
// kernel: sample_net_forward.1
$region0: #{sample_net_forward.1}
  #allocation0 [shape = 'u32[]', space=smem, size = 0x4, offset = 0x4, fixed_abs, tag = 'smem constant byte address 0x4 - core index']
  #allocation1 [shape = 'u32[144,128]{1,0:T(1,128)}', space=vmem, size = 0x12000, scoped, tag = 'internal scratch']
  %s0 = inlined_call_operand.vmem [shape: f32[2,3,256], index: 0, kind: input, shape index: {}]
  %s1 = inlined_call_operand.vmem [shape: f32[4,4,3], index: 1, kind: input, shape index: {}]
  %s2 = inlined_call_operand.vmem [shape: f32[10,5], index: 2, kind: input, shape index: {}]
  %s3 = inlined_call_operand.vmem [shape: f32[10,1], index: 3, kind: input, shape index: {}]
  %s4 = inlined_call_operand.vmem [shape: f32[10,1], index: 4, kind: input, shape index: {}]
  %s5 = inlined_call_operand.vmem [shape: f32[2,4,256], index: 5, kind: output, shape index: {0}]
  %s6 = inlined_call_operand.vmem [shape: f32[2,4,256], index: 6, kind: output, shape index: {1}]
  %s7 = inlined_call_operand.vmem [shape: f32[2,4,256], index: 7, kind: output, shape index: {2}]
  %s8 = inlined_call_operand.vmem [shape: f32[2,4,256], index: 8, kind: output, shape index: {3}]
  %s9 = inlined_call_operand.vmem [shape: f32[2,4,256], index: 9, kind: output, shape index: {4}]
  %s10 = inlined_call_operand.vmem [shape: f32[2,4,256], index: 10, kind: output, shape index: {5}]
  %s11 = inlined_call_operand.vmem [shape: f32[2,4,256], index: 11, kind: output, shape index: {6}]
  %s12 = inlined_call_operand.vmem [shape: f32[2,4,256], index: 12, kind: output, shape index: {7}]
  %s13 = inlined_call_operand.vmem [shape: f32[2,4,256], index: 13, kind: output, shape index: {8}]
  %s14 = inlined_call_operand.vmem [shape: f32[2,4,256], index: 14, kind: output, shape index: {9}]
  %s15 = inlined_call_operand.vmem [shape: f32[2,4,256], index: 15, kind: output, shape index: {10}]
  %s16 = inlined_call_operand.vmem [shape: f32[2,4,256], index: 16, kind: output, shape index: {11}]
  %17 = xla_tuple %s5, %s6, %s7, %s8, %s9, %s10, %s11, %s12, %s13, %s14, %s15, %s16
  %s18 = sld [smem:[#allocation0]]
  $region141: #{sample_net_forward.1} parent=0
    _
  %s20 = ssub.s32 1, %s18
  %s21 = scalar_select 0, %s20, %s18
  loop: start=0, step=1, limit=4
  $region2: #{sample_net_forward.1} parent=0 // loop_pre_header
    _
  $region3: #{sample_net_forward.1} parent=0 // loop_header
    %s23 = sphi 0, %s27
    %p24 = scmp.ge.s32.totalorder %s23, 4
    %s33 = sphi 0, %s35
    %s36 = sphi 0, %s33
    %s37 = sphi 0, %s36
    %s53 = sphi 0, %s37
    %s57 = sphi 0, %s57
    %s59 = sphi 0, %s57
    %s60 = sphi 0, %s59
    %s74 = sphi 0, %s60
    %s78 = sphi 0, %s78
    %s80 = sphi 0, %s78
    %s81 = sphi 0, %s80
    %s95 = sphi 0, %s81
    %s99 = sphi 0, %s99
    %s101 = sphi 0, %s99
    %s102 = sphi 0, %s101
    %s116 = sphi 0, %s102
    %s120 = sphi 0, %s120
    %s122 = sphi 0, %s120
    %s123 = sphi 0, %s122
    %s137 = sphi 0, %s123
    %s143 = sphi 0, %s145
    %s146 = sphi 0, %s143
    %s147 = sphi 0, %s146
    %s163 = sphi 0, %s147
    %s169 = sphi 0, %s171
    %s172 = sphi 0, %s169
    %s173 = sphi 0, %s172
    %s189 = sphi 0, %s173
    %s195 = sphi 0, %s197
    %s198 = sphi 0, %s195
    %s199 = sphi 0, %s198
    %s215 = sphi 0, %s199
    %s221 = sphi 0, %s223
    %s224 = sphi 0, %s221
    %s225 = sphi 0, %s224
    %s241 = sphi 0, %s225
    %s247 = sphi 0, %s249
    %s250 = sphi 0, %s247
    %s251 = sphi 0, %s250
    %s267 = sphi 0, %s251
    %s273 = sphi 0, %s275
    %s276 = sphi 0, %s273
    %s277 = sphi 0, %s276
    %s293 = sphi 0, %s277
    %s299 = sphi 0, %s301
    %s302 = sphi 0, %s299
    %s303 = sphi 0, %s302
    %s319 = sphi 0, %s303
    %s325 = sphi 0, %s327
    %s328 = sphi 0, %s325
    %s329 = sphi 0, %s328
    %s345 = sphi 0, %s329
    %s351 = sphi 0, %s353
    %s354 = sphi 0, %s351
    %s355 = sphi 0, %s354
    %s371 = sphi 0, %s355
    %s377 = sphi 0, %s379
    %s380 = sphi 0, %s377
    %s381 = sphi 0, %s380
    %s397 = sphi 0, %s381
    %s403 = sphi 0, %s405
    %s406 = sphi 0, %s403
    %s407 = sphi 0, %s406
    %s423 = sphi 0, %s407
    %s429 = sphi 0, %s431
    %s432 = sphi 0, %s429
    %s433 = sphi 0, %s432
    %s449 = sphi 0, %s433
  $region4: #{sample_net_forward.1} parent=0 // loop_header_branch
    %26 = sbr.rel (%p24) target = $region8
  $region5: #{sample_net_forward.1} parent=0 // loop_body
    %s28 = ssub.s32 %s23, 1
    %s29 = ssub.s32 %s23, 2
    %s30 = sadd.s32 %s23, 1
    %s31 = ssub.s32 %s23, %s30
    %p32 = scmp.eq.s32.totalorder %s31, 0
    %s34 = sadd.s32 %s33, 1
    %s35 = scalar_select %p32, %s33, %s34
    %p38 = pneg %p32
    %p39 = scmp.eq.s32.totalorder %s23, 1
    %p40 = por %p38, %p39
    %p41 = scmp.ne.s32.totalorder %s33, %s36
    %p42 = scmp.eq.s32.totalorder %s23, 0
    %p43 = por %p41, %p42
    %p44 = scmp.ne.s32.totalorder %s33, %s36
    %p45 = scmp.eq.s32.totalorder %s28, 1
    %p46 = por %p44, %p45
    %p47 = scmp.ne.s32.totalorder %s36, %s37
    %p48 = scmp.eq.s32.totalorder %s28, 0
    %p49 = por %p47, %p48
    %p50 = scmp.ne.s32.totalorder %s36, %s37
    %p51 = scmp.eq.s32.totalorder %s29, 1
    %p52 = por %p50, %p51
    %p54 = scmp.ne.s32.totalorder %s37, %s53
    %p55 = scmp.eq.s32.totalorder %s29, 0
    %p56 = por %p54, %p55
    %s58 = sadd.s32 %s57, 1
    %p61 = scmp.eq.s32.totalorder %s23, 1
    %p62 = scmp.ne.s32.totalorder %s57, %s59
    %p63 = scmp.eq.s32.totalorder %s23, 0
    %p64 = por %p62, %p63
    %p65 = scmp.ne.s32.totalorder %s57, %s59
    %p66 = scmp.eq.s32.totalorder %s28, 1
    %p67 = por %p65, %p66
    %p68 = scmp.ne.s32.totalorder %s59, %s60
    %p69 = scmp.eq.s32.totalorder %s28, 0
    %p70 = por %p68, %p69
    %p71 = scmp.ne.s32.totalorder %s59, %s60
    %p72 = scmp.eq.s32.totalorder %s29, 1
    %p73 = por %p71, %p72
    %p75 = scmp.ne.s32.totalorder %s60, %s74
    %p76 = scmp.eq.s32.totalorder %s29, 0
    %p77 = por %p75, %p76
    %s79 = sadd.s32 %s78, 1
    %p82 = scmp.eq.s32.totalorder %s23, 1
    %p83 = scmp.ne.s32.totalorder %s78, %s80
    %p84 = scmp.eq.s32.totalorder %s23, 0
    %p85 = por %p83, %p84
    %p86 = scmp.ne.s32.totalorder %s78, %s80
    %p87 = scmp.eq.s32.totalorder %s28, 1
    %p88 = por %p86, %p87
    %p89 = scmp.ne.s32.totalorder %s80, %s81
    %p90 = scmp.eq.s32.totalorder %s28, 0
    %p91 = por %p89, %p90
    %p92 = scmp.ne.s32.totalorder %s80, %s81
    %p93 = scmp.eq.s32.totalorder %s29, 1
    %p94 = por %p92, %p93
    %p96 = scmp.ne.s32.totalorder %s81, %s95
    %p97 = scmp.eq.s32.totalorder %s29, 0
    %p98 = por %p96, %p97
    %s100 = sadd.s32 %s99, 1
    %p103 = scmp.eq.s32.totalorder %s23, 1
    %p104 = scmp.ne.s32.totalorder %s99, %s101
    %p105 = scmp.eq.s32.totalorder %s23, 0
    %p106 = por %p104, %p105
    %p107 = scmp.ne.s32.totalorder %s99, %s101
    %p108 = scmp.eq.s32.totalorder %s28, 1
    %p109 = por %p107, %p108
    %p110 = scmp.ne.s32.totalorder %s101, %s102
    %p111 = scmp.eq.s32.totalorder %s28, 0
    %p112 = por %p110, %p111
    %p113 = scmp.ne.s32.totalorder %s101, %s102
    %p114 = scmp.eq.s32.totalorder %s29, 1
    %p115 = por %p113, %p114
    %p117 = scmp.ne.s32.totalorder %s102, %s116
    %p118 = scmp.eq.s32.totalorder %s29, 0
    %p119 = por %p117, %p118
    %s121 = sadd.s32 %s120, 1
    %p124 = scmp.eq.s32.totalorder %s23, 1
    %p125 = scmp.ne.s32.totalorder %s120, %s122
    %p126 = scmp.eq.s32.totalorder %s23, 0
    %p127 = por %p125, %p126
    %p128 = scmp.ne.s32.totalorder %s120, %s122
    %p129 = scmp.eq.s32.totalorder %s28, 1
    %p130 = por %p128, %p129
    %p131 = scmp.ne.s32.totalorder %s122, %s123
    %p132 = scmp.eq.s32.totalorder %s28, 0
    %p133 = por %p131, %p132
    %p134 = scmp.ne.s32.totalorder %s122, %s123
    %p135 = scmp.eq.s32.totalorder %s29, 1
    %p136 = por %p134, %p135
    %p138 = scmp.ne.s32.totalorder %s123, %s137
    %p139 = scmp.eq.s32.totalorder %s29, 0
    %p140 = por %p138, %p139
    %s141 = ssub.s32 %s23, %s30
    %p142 = scmp.eq.s32.totalorder %s141, 0
    %s144 = sadd.s32 %s143, 1
    %s145 = scalar_select %p142, %s143, %s144
    %p148 = pneg %p142
    %p149 = scmp.eq.s32.totalorder %s23, 1
    %p150 = por %p148, %p149
    %p151 = scmp.ne.s32.totalorder %s143, %s146
    %p152 = scmp.eq.s32.totalorder %s23, 0
    %p153 = por %p151, %p152
    %p154 = scmp.ne.s32.totalorder %s143, %s146
    %p155 = scmp.eq.s32.totalorder %s28, 1
    %p156 = por %p154, %p155
    %p157 = scmp.ne.s32.totalorder %s146, %s147
    %p158 = scmp.eq.s32.totalorder %s28, 0
    %p159 = por %p157, %p158
    %p160 = scmp.ne.s32.totalorder %s146, %s147
    %p161 = scmp.eq.s32.totalorder %s29, 1
    %p162 = por %p160, %p161
    %p164 = scmp.ne.s32.totalorder %s147, %s163
    %p165 = scmp.eq.s32.totalorder %s29, 0
    %p166 = por %p164, %p165
    %s167 = ssub.s32 %s23, %s30
    %p168 = scmp.eq.s32.totalorder %s167, 0
    %s170 = sadd.s32 %s169, 1
    %s171 = scalar_select %p168, %s169, %s170
    %p174 = pneg %p168
    %p175 = scmp.eq.s32.totalorder %s23, 1
    %p176 = por %p174, %p175
    %p177 = scmp.ne.s32.totalorder %s169, %s172
    %p178 = scmp.eq.s32.totalorder %s23, 0
    %p179 = por %p177, %p178
    %p180 = scmp.ne.s32.totalorder %s169, %s172
    %p181 = scmp.eq.s32.totalorder %s28, 1
    %p182 = por %p180, %p181
    %p183 = scmp.ne.s32.totalorder %s172, %s173
    %p184 = scmp.eq.s32.totalorder %s28, 0
    %p185 = por %p183, %p184
    %p186 = scmp.ne.s32.totalorder %s172, %s173
    %p187 = scmp.eq.s32.totalorder %s29, 1
    %p188 = por %p186, %p187
    %p190 = scmp.ne.s32.totalorder %s173, %s189
    %p191 = scmp.eq.s32.totalorder %s29, 0
    %p192 = por %p190, %p191
    %s193 = ssub.s32 %s23, %s30
    %p194 = scmp.eq.s32.totalorder %s193, 0
    %s196 = sadd.s32 %s195, 1
    %s197 = scalar_select %p194, %s195, %s196
    %p200 = pneg %p194
    %p201 = scmp.eq.s32.totalorder %s23, 1
    %p202 = por %p200, %p201
    %p203 = scmp.ne.s32.totalorder %s195, %s198
    %p204 = scmp.eq.s32.totalorder %s23, 0
    %p205 = por %p203, %p204
    %p206 = scmp.ne.s32.totalorder %s195, %s198
    %p207 = scmp.eq.s32.totalorder %s28, 1
    %p208 = por %p206, %p207
    %p209 = scmp.ne.s32.totalorder %s198, %s199
    %p210 = scmp.eq.s32.totalorder %s28, 0
    %p211 = por %p209, %p210
    %p212 = scmp.ne.s32.totalorder %s198, %s199
    %p213 = scmp.eq.s32.totalorder %s29, 1
    %p214 = por %p212, %p213
    %p216 = scmp.ne.s32.totalorder %s199, %s215
    %p217 = scmp.eq.s32.totalorder %s29, 0
    %p218 = por %p216, %p217
    %s219 = ssub.s32 %s23, %s30
    %p220 = scmp.eq.s32.totalorder %s219, 0
    %s222 = sadd.s32 %s221, 1
    %s223 = scalar_select %p220, %s221, %s222
    %p226 = pneg %p220
    %p227 = scmp.eq.s32.totalorder %s23, 1
    %p228 = por %p226, %p227
    %p229 = scmp.ne.s32.totalorder %s221, %s224
    %p230 = scmp.eq.s32.totalorder %s23, 0
    %p231 = por %p229, %p230
    %p232 = scmp.ne.s32.totalorder %s221, %s224
    %p233 = scmp.eq.s32.totalorder %s28, 1
    %p234 = por %p232, %p233
    %p235 = scmp.ne.s32.totalorder %s224, %s225
    %p236 = scmp.eq.s32.totalorder %s28, 0
    %p237 = por %p235, %p236
    %p238 = scmp.ne.s32.totalorder %s224, %s225
    %p239 = scmp.eq.s32.totalorder %s29, 1
    %p240 = por %p238, %p239
    %p242 = scmp.ne.s32.totalorder %s225, %s241
    %p243 = scmp.eq.s32.totalorder %s29, 0
    %p244 = por %p242, %p243
    %s245 = ssub.s32 %s23, %s30
    %p246 = scmp.eq.s32.totalorder %s245, 0
    %s248 = sadd.s32 %s247, 1
    %s249 = scalar_select %p246, %s247, %s248
    %p252 = pneg %p246
    %p253 = scmp.eq.s32.totalorder %s23, 1
    %p254 = por %p252, %p253
    %p255 = scmp.ne.s32.totalorder %s247, %s250
    %p256 = scmp.eq.s32.totalorder %s23, 0
    %p257 = por %p255, %p256
    %p258 = scmp.ne.s32.totalorder %s247, %s250
    %p259 = scmp.eq.s32.totalorder %s28, 1
    %p260 = por %p258, %p259
    %p261 = scmp.ne.s32.totalorder %s250, %s251
    %p262 = scmp.eq.s32.totalorder %s28, 0
    %p263 = por %p261, %p262
    %p264 = scmp.ne.s32.totalorder %s250, %s251
    %p265 = scmp.eq.s32.totalorder %s29, 1
    %p266 = por %p264, %p265
    %p268 = scmp.ne.s32.totalorder %s251, %s267
    %p269 = scmp.eq.s32.totalorder %s29, 0
    %p270 = por %p268, %p269
    %s271 = ssub.s32 %s23, %s30
    %p272 = scmp.eq.s32.totalorder %s271, 0
    %s274 = sadd.s32 %s273, 1
    %s275 = scalar_select %p272, %s273, %s274
    %p278 = pneg %p272
    %p279 = scmp.eq.s32.totalorder %s23, 1
    %p280 = por %p278, %p279
    %p281 = scmp.ne.s32.totalorder %s273, %s276
    %p282 = scmp.eq.s32.totalorder %s23, 0
    %p283 = por %p281, %p282
    %p284 = scmp.ne.s32.totalorder %s273, %s276
    %p285 = scmp.eq.s32.totalorder %s28, 1
    %p286 = por %p284, %p285
    %p287 = scmp.ne.s32.totalorder %s276, %s277
    %p288 = scmp.eq.s32.totalorder %s28, 0
    %p289 = por %p287, %p288
    %p290 = scmp.ne.s32.totalorder %s276, %s277
    %p291 = scmp.eq.s32.totalorder %s29, 1
    %p292 = por %p290, %p291
    %p294 = scmp.ne.s32.totalorder %s277, %s293
    %p295 = scmp.eq.s32.totalorder %s29, 0
    %p296 = por %p294, %p295
    %s297 = ssub.s32 %s23, %s30
    %p298 = scmp.eq.s32.totalorder %s297, 0
    %s300 = sadd.s32 %s299, 1
    %s301 = scalar_select %p298, %s299, %s300
    %p304 = pneg %p298
    %p305 = scmp.eq.s32.totalorder %s23, 1
    %p306 = por %p304, %p305
    %p307 = scmp.ne.s32.totalorder %s299, %s302
    %p308 = scmp.eq.s32.totalorder %s23, 0
    %p309 = por %p307, %p308
    %p310 = scmp.ne.s32.totalorder %s299, %s302
    %p311 = scmp.eq.s32.totalorder %s28, 1
    %p312 = por %p310, %p311
    %p313 = scmp.ne.s32.totalorder %s302, %s303
    %p314 = scmp.eq.s32.totalorder %s28, 0
    %p315 = por %p313, %p314
    %p316 = scmp.ne.s32.totalorder %s302, %s303
    %p317 = scmp.eq.s32.totalorder %s29, 1
    %p318 = por %p316, %p317
    %p320 = scmp.ne.s32.totalorder %s303, %s319
    %p321 = scmp.eq.s32.totalorder %s29, 0
    %p322 = por %p320, %p321
    %s323 = ssub.s32 %s23, %s30
    %p324 = scmp.eq.s32.totalorder %s323, 0
    %s326 = sadd.s32 %s325, 1
    %s327 = scalar_select %p324, %s325, %s326
    %p330 = pneg %p324
    %p331 = scmp.eq.s32.totalorder %s23, 1
    %p332 = por %p330, %p331
    %p333 = scmp.ne.s32.totalorder %s325, %s328
    %p334 = scmp.eq.s32.totalorder %s23, 0
    %p335 = por %p333, %p334
    %p336 = scmp.ne.s32.totalorder %s325, %s328
    %p337 = scmp.eq.s32.totalorder %s28, 1
    %p338 = por %p336, %p337
    %p339 = scmp.ne.s32.totalorder %s328, %s329
    %p340 = scmp.eq.s32.totalorder %s28, 0
    %p341 = por %p339, %p340
    %p342 = scmp.ne.s32.totalorder %s328, %s329
    %p343 = scmp.eq.s32.totalorder %s29, 1
    %p344 = por %p342, %p343
    %p346 = scmp.ne.s32.totalorder %s329, %s345
    %p347 = scmp.eq.s32.totalorder %s29, 0
    %p348 = por %p346, %p347
    %s349 = ssub.s32 %s23, %s30
    %p350 = scmp.eq.s32.totalorder %s349, 0
    %s352 = sadd.s32 %s351, 1
    %s353 = scalar_select %p350, %s351, %s352
    %p356 = pneg %p350
    %p357 = scmp.eq.s32.totalorder %s23, 1
    %p358 = por %p356, %p357
    %p359 = scmp.ne.s32.totalorder %s351, %s354
    %p360 = scmp.eq.s32.totalorder %s23, 0
    %p361 = por %p359, %p360
    %p362 = scmp.ne.s32.totalorder %s351, %s354
    %p363 = scmp.eq.s32.totalorder %s28, 1
    %p364 = por %p362, %p363
    %p365 = scmp.ne.s32.totalorder %s354, %s355
    %p366 = scmp.eq.s32.totalorder %s28, 0
    %p367 = por %p365, %p366
    %p368 = scmp.ne.s32.totalorder %s354, %s355
    %p369 = scmp.eq.s32.totalorder %s29, 1
    %p370 = por %p368, %p369
    %p372 = scmp.ne.s32.totalorder %s355, %s371
    %p373 = scmp.eq.s32.totalorder %s29, 0
    %p374 = por %p372, %p373
    %s375 = ssub.s32 %s23, %s30
    %p376 = scmp.eq.s32.totalorder %s375, 0
    %s378 = sadd.s32 %s377, 1
    %s379 = scalar_select %p376, %s377, %s378
    %p382 = pneg %p376
    %p383 = scmp.eq.s32.totalorder %s23, 1
    %p384 = por %p382, %p383
    %p385 = scmp.ne.s32.totalorder %s377, %s380
    %p386 = scmp.eq.s32.totalorder %s23, 0
    %p387 = por %p385, %p386
    %p388 = scmp.ne.s32.totalorder %s377, %s380
    %p389 = scmp.eq.s32.totalorder %s28, 1
    %p390 = por %p388, %p389
    %p391 = scmp.ne.s32.totalorder %s380, %s381
    %p392 = scmp.eq.s32.totalorder %s28, 0
    %p393 = por %p391, %p392
    %p394 = scmp.ne.s32.totalorder %s380, %s381
    %p395 = scmp.eq.s32.totalorder %s29, 1
    %p396 = por %p394, %p395
    %p398 = scmp.ne.s32.totalorder %s381, %s397
    %p399 = scmp.eq.s32.totalorder %s29, 0
    %p400 = por %p398, %p399
    %s401 = ssub.s32 %s23, %s30
    %p402 = scmp.eq.s32.totalorder %s401, 0
    %s404 = sadd.s32 %s403, 1
    %s405 = scalar_select %p402, %s403, %s404
    %p408 = pneg %p402
    %p409 = scmp.eq.s32.totalorder %s23, 1
    %p410 = por %p408, %p409
    %p411 = scmp.ne.s32.totalorder %s403, %s406
    %p412 = scmp.eq.s32.totalorder %s23, 0
    %p413 = por %p411, %p412
    %p414 = scmp.ne.s32.totalorder %s403, %s406
    %p415 = scmp.eq.s32.totalorder %s28, 1
    %p416 = por %p414, %p415
    %p417 = scmp.ne.s32.totalorder %s406, %s407
    %p418 = scmp.eq.s32.totalorder %s28, 0
    %p419 = por %p417, %p418
    %p420 = scmp.ne.s32.totalorder %s406, %s407
    %p421 = scmp.eq.s32.totalorder %s29, 1
    %p422 = por %p420, %p421
    %p424 = scmp.ne.s32.totalorder %s407, %s423
    %p425 = scmp.eq.s32.totalorder %s29, 0
    %p426 = por %p424, %p425
    %s427 = ssub.s32 %s23, %s30
    %p428 = scmp.eq.s32.totalorder %s427, 0
    %s430 = sadd.s32 %s429, 1
    %s431 = scalar_select %p428, %s429, %s430
    %p434 = pneg %p428
    %p435 = scmp.eq.s32.totalorder %s23, 1
    %p436 = por %p434, %p435
    %p437 = scmp.ne.s32.totalorder %s429, %s432
    %p438 = scmp.eq.s32.totalorder %s23, 0
    %p439 = por %p437, %p438
    %p440 = scmp.ne.s32.totalorder %s429, %s432
    %p441 = scmp.eq.s32.totalorder %s28, 1
    %p442 = por %p440, %p441
    %p443 = scmp.ne.s32.totalorder %s432, %s433
    %p444 = scmp.eq.s32.totalorder %s28, 0
    %p445 = por %p443, %p444
    %p446 = scmp.ne.s32.totalorder %s432, %s433
    %p447 = scmp.eq.s32.totalorder %s29, 1
    %p448 = por %p446, %p447
    %p450 = scmp.ne.s32.totalorder %s433, %s449
    %p451 = scmp.eq.s32.totalorder %s29, 0
    %p452 = por %p450, %p451
    %p453 = scmp.le.s32.totalorder 1, %s23
    %p454 = scmp.lt.s32.totalorder %s23, 3
    %p455 = pnand %p453, %p454
    %p456 = pneg %p455
    // Predicated region
    $region9: #{sample_net_forward.1} parent=5 // pred_check
      _
    $region10: #{sample_net_forward.1} parent=5 // pred_check_branch
      %458 = sbr.rel (%p455) target = $region12
    $region11: #{sample_net_forward.1} parent=5 // pred_region
      %s459 = ssub.s32 %s23, 1
      // Predicated region
      $region13: #{sample_net_forward.1} parent=11 // pred_check
        %p460 = pneg %p70
      $region14: #{sample_net_forward.1} parent=11 // pred_check_branch
        %462 = sbr.rel (%p460) target = $region16
      $region15: #{sample_net_forward.1} parent=11 // pred_region
        _
      $region16: #{sample_net_forward.1} parent=11 // pred_fallthru
        _
      // Predicated region
      $region17: #{sample_net_forward.1} parent=11 // pred_check
        %p463 = pneg %p91
      $region18: #{sample_net_forward.1} parent=11 // pred_check_branch
        %465 = sbr.rel (%p463) target = $region20
      $region19: #{sample_net_forward.1} parent=11 // pred_region
        _
      $region20: #{sample_net_forward.1} parent=11 // pred_fallthru
        _
      // Predicated region
      $region21: #{sample_net_forward.1} parent=11 // pred_check
        %p466 = pneg %p112
      $region22: #{sample_net_forward.1} parent=11 // pred_check_branch
        %468 = sbr.rel (%p466) target = $region24
      $region23: #{sample_net_forward.1} parent=11 // pred_region
        _
      $region24: #{sample_net_forward.1} parent=11 // pred_fallthru
        _
      // Predicated region
      $region25: #{sample_net_forward.1} parent=11 // pred_check
        %p469 = pneg %p133
      $region26: #{sample_net_forward.1} parent=11 // pred_check_branch
        %471 = sbr.rel (%p469) target = $region28
      $region27: #{sample_net_forward.1} parent=11 // pred_region
        _
      $region28: #{sample_net_forward.1} parent=11 // pred_fallthru
        _
    $region12: #{sample_net_forward.1} parent=5 // pred_fallthru
      _
    %p472 = scmp.lt.s32.totalorder %s23, 2
    // Predicated region
    $region29: #{sample_net_forward.1} parent=5 // pred_check
      %p473 = pneg %p472
    $region30: #{sample_net_forward.1} parent=5 // pred_check_branch
      %475 = sbr.rel (%p473) target = $region32
    $region31: #{sample_net_forward.1} parent=5 // pred_region
      // Predicated region
      $region33: #{sample_net_forward.1} parent=31 // pred_check
        %p476 = pneg %p43
      $region34: #{sample_net_forward.1} parent=31 // pred_check_branch
        %478 = sbr.rel (%p476) target = $region36
      $region35: #{sample_net_forward.1} parent=31 // pred_region
        %p479 = scmp.lt.s32.totalorder %s23, 1
        %s480 = scalar_select %p479, %s23, 1
        %s481 = smul.addr %s480, 2
        %s482 = smul.addr %s481, 4
        %s483 = scalar_lea.vmem %s0, %s482
      $region36: #{sample_net_forward.1} parent=31 // pred_fallthru
        _
    $region32: #{sample_net_forward.1} parent=5 // pred_fallthru
      _
    %p484 = scmp.le.s32.totalorder 1, %s23
    %p485 = scmp.lt.s32.totalorder %s23, 3
    %p486 = pnand %p484, %p485
    %p487 = pneg %p486
    // Predicated region
    $region37: #{sample_net_forward.1} parent=5 // pred_check
      _
    $region38: #{sample_net_forward.1} parent=5 // pred_check_branch
      %489 = sbr.rel (%p486) target = $region40
    $region39: #{sample_net_forward.1} parent=5 // pred_region
      %s490 = ssub.s32 %s23, 1
      %p491 = scmp.lt.s32.totalorder %s28, 1
      %s492 = scalar_select %p491, %s28, 1
      %s493 = smul.addr %s492, 2
      %s494 = smul.addr %s493, 4
      %s495 = scalar_lea.vmem %s0, %s494
      %p496 = pneg %p49
      %p497 = pneg %p46
      %p498 = pneg %p70
      %p499 = pneg %p67
      %p500 = pneg %p91
      %p501 = pneg %p88
      %p502 = pneg %p112
      %p503 = pneg %p109
      %p504 = pneg %p133
      %p505 = pneg %p130
      %p506 = pneg %p159
      %p507 = pneg %p156
      %p508 = scmp.lt.s32.totalorder %s28, 1
      %s509 = scalar_select %p508, %s28, 1
      %s510 = smul.addr %s509, 2
      %s511 = smul.addr %s510, 4
      %s512 = scalar_lea.vmem %s5, %s511
      %p513 = pneg %p185
      %p514 = pneg %p182
      %p515 = scmp.lt.s32.totalorder %s28, 1
      %s516 = scalar_select %p515, %s28, 1
      %s517 = smul.addr %s516, 2
      %s518 = smul.addr %s517, 4
      %s519 = scalar_lea.vmem %s6, %s518
      %p520 = pneg %p211
      %p521 = pneg %p208
      %p522 = scmp.lt.s32.totalorder %s28, 1
      %s523 = scalar_select %p522, %s28, 1
      %s524 = smul.addr %s523, 2
      %s525 = smul.addr %s524, 4
      %s526 = scalar_lea.vmem %s7, %s525
      %p527 = pneg %p237
      %p528 = pneg %p234
      %p529 = scmp.lt.s32.totalorder %s28, 1
      %s530 = scalar_select %p529, %s28, 1
      %s531 = smul.addr %s530, 2
      %s532 = smul.addr %s531, 4
      %s533 = scalar_lea.vmem %s8, %s532
      %p534 = pneg %p263
      %p535 = pneg %p260
      %p536 = scmp.lt.s32.totalorder %s28, 1
      %s537 = scalar_select %p536, %s28, 1
      %s538 = smul.addr %s537, 2
      %s539 = smul.addr %s538, 4
      %s540 = scalar_lea.vmem %s9, %s539
      %p541 = pneg %p289
      %p542 = pneg %p286
      %p543 = scmp.lt.s32.totalorder %s28, 1
      %s544 = scalar_select %p543, %s28, 1
      %s545 = smul.addr %s544, 2
      %s546 = smul.addr %s545, 4
      %s547 = scalar_lea.vmem %s10, %s546
      %p548 = pneg %p315
      %p549 = pneg %p312
      %p550 = scmp.lt.s32.totalorder %s28, 1
      %s551 = scalar_select %p550, %s28, 1
      %s552 = smul.addr %s551, 2
      %s553 = smul.addr %s552, 4
      %s554 = scalar_lea.vmem %s11, %s553
      %p555 = pneg %p341
      %p556 = pneg %p338
      %p557 = scmp.lt.s32.totalorder %s28, 1
      %s558 = scalar_select %p557, %s28, 1
      %s559 = smul.addr %s558, 2
      %s560 = smul.addr %s559, 4
      %s561 = scalar_lea.vmem %s12, %s560
      %p562 = pneg %p367
      %p563 = pneg %p364
      %p564 = scmp.lt.s32.totalorder %s28, 1
      %s565 = scalar_select %p564, %s28, 1
      %s566 = smul.addr %s565, 2
      %s567 = smul.addr %s566, 4
      %s568 = scalar_lea.vmem %s13, %s567
      %p569 = pneg %p393
      %p570 = pneg %p390
      %p571 = scmp.lt.s32.totalorder %s28, 1
      %s572 = scalar_select %p571, %s28, 1
      %s573 = smul.addr %s572, 2
      %s574 = smul.addr %s573, 4
      %s575 = scalar_lea.vmem %s14, %s574
      %p576 = pneg %p419
      %p577 = pneg %p416
      %p578 = scmp.lt.s32.totalorder %s28, 1
      %s579 = scalar_select %p578, %s28, 1
      %s580 = smul.addr %s579, 2
      %s581 = smul.addr %s580, 4
      %s582 = scalar_lea.vmem %s15, %s581
      %p583 = pneg %p445
      %p584 = pneg %p442
      %p585 = scmp.lt.s32.totalorder %s28, 1
      %s586 = scalar_select %p585, %s28, 1
      %s587 = smul.addr %s586, 2
      %s588 = smul.addr %s587, 4
      %s589 = scalar_lea.vmem %s16, %s588
      %p590 = scmp.lt.s32.totalorder %s28, 1
      %s591 = scalar_select %p590, %s28, 1
      %s592 = smul.addr %s591, 2
      %s593 = smul.addr %s592, 4
      %s594 = scalar_lea.vmem %s0, %s593
      %p595 = scmp.lt.s32.totalorder %s28, 1
      %s596 = scalar_select %p595, %s28, 1
      %s597 = smul.addr %s596, 2
      %s598 = smul.addr %s597, 4
      %s599 = scalar_lea.vmem %s5, %s598
      %p600 = scmp.lt.s32.totalorder %s28, 1
      %s601 = scalar_select %p600, %s28, 1
      %s602 = smul.addr %s601, 2
      %s603 = smul.addr %s602, 4
      %s604 = scalar_lea.vmem %s6, %s603
      %p605 = scmp.lt.s32.totalorder %s28, 1
      %s606 = scalar_select %p605, %s28, 1
      %s607 = smul.addr %s606, 2
      %s608 = smul.addr %s607, 4
      %s609 = scalar_lea.vmem %s7, %s608
      %p610 = scmp.lt.s32.totalorder %s28, 1
      %s611 = scalar_select %p610, %s28, 1
      %s612 = smul.addr %s611, 2
      %s613 = smul.addr %s612, 4
      %s614 = scalar_lea.vmem %s8, %s613
      %p615 = scmp.lt.s32.totalorder %s28, 1
      %s616 = scalar_select %p615, %s28, 1
      %s617 = smul.addr %s616, 2
      %s618 = smul.addr %s617, 4
      %s619 = scalar_lea.vmem %s9, %s618
      %p620 = scmp.lt.s32.totalorder %s28, 1
      %s621 = scalar_select %p620, %s28, 1
      %s622 = smul.addr %s621, 2
      %s623 = smul.addr %s622, 4
      %s624 = scalar_lea.vmem %s10, %s623
      %p625 = scmp.lt.s32.totalorder %s28, 1
      %s626 = scalar_select %p625, %s28, 1
      %s627 = smul.addr %s626, 2
      %s628 = smul.addr %s627, 4
      %s629 = scalar_lea.vmem %s11, %s628
      %p630 = scmp.lt.s32.totalorder %s28, 1
      %s631 = scalar_select %p630, %s28, 1
      %s632 = smul.addr %s631, 2
      %s633 = smul.addr %s632, 4
      %s634 = scalar_lea.vmem %s12, %s633
      %p635 = scmp.lt.s32.totalorder %s28, 1
      %s636 = scalar_select %p635, %s28, 1
      %s637 = smul.addr %s636, 2
      %s638 = smul.addr %s637, 4
      %s639 = scalar_lea.vmem %s13, %s638
      %p640 = scmp.lt.s32.totalorder %s28, 1
      %s641 = scalar_select %p640, %s28, 1
      %s642 = smul.addr %s641, 2
      %s643 = smul.addr %s642, 4
      %s644 = scalar_lea.vmem %s14, %s643
      %p645 = scmp.lt.s32.totalorder %s28, 1
      %s646 = scalar_select %p645, %s28, 1
      %s647 = smul.addr %s646, 2
      %s648 = smul.addr %s647, 4
      %s649 = scalar_lea.vmem %s15, %s648
      %p650 = scmp.lt.s32.totalorder %s28, 1
      %s651 = scalar_select %p650, %s28, 1
      %s652 = smul.addr %s651, 2
      %s653 = smul.addr %s652, 4
      %s654 = scalar_lea.vmem %s16, %s653
      %v655 = vld [vmem:[%s594] sm:$0x77]
      %v656 = vld [vmem:[%s1] sm:$0xf]
      %v657 = vld [vmem:[%s1 + $0x4] sm:$0xf]
      %v658 = vld [vmem:[%s1 + $0x8] sm:$0xf]
      %v659 = vld [vmem:[%s1 + $0xc] sm:$0xf]
      %661 = vset.pattern.permute.xlu0 0
      %662 = vperm.xlu0 %661, %v656
      %v663 = vpop.permute.xlu0 %662
      %666 = vset.pattern.permute.xlu0 0
      %667 = vperm.xlu0 %666, %v657
      %v668 = vpop.permute.xlu0 %667
      %671 = vset.pattern.permute.xlu0 0
      %672 = vperm.xlu0 %671, %v658
      %v673 = vpop.permute.xlu0 %672
      %676 = vset.pattern.permute.xlu0 0
      %677 = vperm.xlu0 %676, %v659
      %v678 = vpop.permute.xlu0 %677
      %v681 = vlaneseq
      %v682 = vshrl.u32 %v681, 7
      %v683 = vsub.s32 0, %v682
      %v684 = vrot.slane %v655, %v683
      %v685 = vlaneseq
      %v686 = vshrl.u32 %v685, 7
      %v687 = vsub.s32 4, %v686
      %v688 = vrot.slane %v655, %v687
      %v691 = vlaneseq
      %v692 = vshrl.u32 %v691, 7
      %v693 = vsub.s32 0, %v692
      %v694 = vrot.slane %v684, %v693
      %v695 = vlaneseq
      %v696 = vshrl.u32 %v695, 7
      %v697 = vsub.s32 0, %v696
      %v698 = vrot.slane %v688, %v697
      %v699 = vmul.f32 %v663, %v694
      %v700 = vmul.f32 %v663, %v698
      %v701 = vmul.f32 %v668, %v694
      %v702 = vmul.f32 %v668, %v698
      %v703 = vmul.f32 %v673, %v694
      %v704 = vmul.f32 %v673, %v698
      %v705 = vmul.f32 %v678, %v694
      %v706 = vmul.f32 %v678, %v698
      %707 = vset.pattern.permute.xlu0 1
      %708 = vperm.xlu0 %707, %v656
      %v709 = vpop.permute.xlu0 %708
      %711 = vset.pattern.permute.xlu0 1
      %712 = vperm.xlu0 %711, %v657
      %v713 = vpop.permute.xlu0 %712
      %715 = vset.pattern.permute.xlu0 1
      %716 = vperm.xlu0 %715, %v658
      %v717 = vpop.permute.xlu0 %716
      %719 = vset.pattern.permute.xlu0 1
      %720 = vperm.xlu0 %719, %v659
      %v721 = vpop.permute.xlu0 %720
      %v723 = vlaneseq
      %v724 = vshrl.u32 %v723, 7
      %v725 = vsub.s32 1, %v724
      %v726 = vrot.slane %v655, %v725
      %v727 = vlaneseq
      %v728 = vshrl.u32 %v727, 7
      %v729 = vsub.s32 5, %v728
      %v730 = vrot.slane %v655, %v729
      %v733 = vlaneseq
      %v734 = vshrl.u32 %v733, 7
      %v735 = vsub.s32 1, %v734
      %v736 = vrot.slane %v726, %v735
      %v737 = vlaneseq
      %v738 = vshrl.u32 %v737, 7
      %v739 = vsub.s32 1, %v738
      %v740 = vrot.slane %v730, %v739
      %v741 = vmul.f32 %v709, %v736
      %v742 = vmul.f32 %v709, %v740
      %v743 = vmul.f32 %v713, %v736
      %v744 = vmul.f32 %v713, %v740
      %v745 = vmul.f32 %v717, %v736
      %v746 = vmul.f32 %v717, %v740
      %v747 = vmul.f32 %v721, %v736
      %v748 = vmul.f32 %v721, %v740
      %v749 = vadd.f32 %v699, %v741
      %v750 = vadd.f32 %v700, %v742
      %v751 = vadd.f32 %v701, %v743
      %v752 = vadd.f32 %v702, %v744
      %v753 = vadd.f32 %v703, %v745
      %v754 = vadd.f32 %v704, %v746
      %v755 = vadd.f32 %v705, %v747
      %v756 = vadd.f32 %v706, %v748
      %757 = vset.pattern.permute.xlu0 2
      %758 = vperm.xlu0 %757, %v656
      %v759 = vpop.permute.xlu0 %758
      %761 = vset.pattern.permute.xlu0 2
      %762 = vperm.xlu0 %761, %v657
      %v763 = vpop.permute.xlu0 %762
      %765 = vset.pattern.permute.xlu0 2
      %766 = vperm.xlu0 %765, %v658
      %v767 = vpop.permute.xlu0 %766
      %769 = vset.pattern.permute.xlu0 2
      %770 = vperm.xlu0 %769, %v659
      %v771 = vpop.permute.xlu0 %770
      %v773 = vlaneseq
      %v774 = vshrl.u32 %v773, 7
      %v775 = vsub.s32 2, %v774
      %v776 = vrot.slane %v655, %v775
      %v777 = vlaneseq
      %v778 = vshrl.u32 %v777, 7
      %v779 = vsub.s32 6, %v778
      %v780 = vrot.slane %v655, %v779
      %v783 = vlaneseq
      %v784 = vshrl.u32 %v783, 7
      %v785 = vsub.s32 2, %v784
      %v786 = vrot.slane %v776, %v785
      %v787 = vlaneseq
      %v788 = vshrl.u32 %v787, 7
      %v789 = vsub.s32 2, %v788
      %v790 = vrot.slane %v780, %v789
      %v791 = vmul.f32 %v759, %v786
      %v792 = vmul.f32 %v759, %v790
      %v793 = vmul.f32 %v763, %v786
      %v794 = vmul.f32 %v763, %v790
      %v795 = vmul.f32 %v767, %v786
      %v796 = vmul.f32 %v767, %v790
      %v797 = vmul.f32 %v771, %v786
      %v798 = vmul.f32 %v771, %v790
      %v799 = vadd.f32 %v749, %v791
      %v800 = vadd.f32 %v750, %v792
      %v801 = vadd.f32 %v751, %v793
      %v802 = vadd.f32 %v752, %v794
      %v803 = vadd.f32 %v753, %v795
      %v804 = vadd.f32 %v754, %v796
      %v805 = vadd.f32 %v755, %v797
      %v806 = vadd.f32 %v756, %v798
      %vm807 = vcmask 1043456
      %v808 = vsel %vm807, %v799, -inf
      %v809 = vrot.slane %v808, 4
      %v810 = vmax.f32 %v808, %v809
      %v811 = vrot.slane %v810, 2
      %v812 = vmax.f32 %v810, %v811
      %v813 = vrot.slane %v812, 1
      %v814 = vmax.f32 %v812, %v813
      %v815 = vsel %vm807, %v800, -inf
      %v816 = vrot.slane %v815, 4
      %v817 = vmax.f32 %v815, %v816
      %v818 = vrot.slane %v817, 2
      %v819 = vmax.f32 %v817, %v818
      %v820 = vrot.slane %v819, 1
      %v821 = vmax.f32 %v819, %v820
      %v822 = vsel %vm807, %v801, -inf
      %v823 = vrot.slane %v822, 4
      %v824 = vmax.f32 %v822, %v823
      %v825 = vrot.slane %v824, 2
      %v826 = vmax.f32 %v824, %v825
      %v827 = vrot.slane %v826, 1
      %v828 = vmax.f32 %v826, %v827
      %v829 = vsel %vm807, %v802, -inf
      %v830 = vrot.slane %v829, 4
      %v831 = vmax.f32 %v829, %v830
      %v832 = vrot.slane %v831, 2
      %v833 = vmax.f32 %v831, %v832
      %v834 = vrot.slane %v833, 1
      %v835 = vmax.f32 %v833, %v834
      %v836 = vsel %vm807, %v803, -inf
      %v837 = vrot.slane %v836, 4
      %v838 = vmax.f32 %v836, %v837
      %v839 = vrot.slane %v838, 2
      %v840 = vmax.f32 %v838, %v839
      %v841 = vrot.slane %v840, 1
      %v842 = vmax.f32 %v840, %v841
      %v843 = vsel %vm807, %v804, -inf
      %v844 = vrot.slane %v843, 4
      %v845 = vmax.f32 %v843, %v844
      %v846 = vrot.slane %v845, 2
      %v847 = vmax.f32 %v845, %v846
      %v848 = vrot.slane %v847, 1
      %v849 = vmax.f32 %v847, %v848
      %v850 = vsel %vm807, %v805, -inf
      %v851 = vrot.slane %v850, 4
      %v852 = vmax.f32 %v850, %v851
      %v853 = vrot.slane %v852, 2
      %v854 = vmax.f32 %v852, %v853
      %v855 = vrot.slane %v854, 1
      %v856 = vmax.f32 %v854, %v855
      %v857 = vsel %vm807, %v806, -inf
      %v858 = vrot.slane %v857, 4
      %v859 = vmax.f32 %v857, %v858
      %v860 = vrot.slane %v859, 2
      %v861 = vmax.f32 %v859, %v860
      %v862 = vrot.slane %v861, 1
      %v863 = vmax.f32 %v861, %v862
      %v864 = vsub.f32 %v799, %v814
      %v865 = vsub.f32 %v800, %v821
      %v866 = vsub.f32 %v801, %v828
      %v867 = vsub.f32 %v802, %v835
      %v868 = vsub.f32 %v803, %v842
      %v869 = vsub.f32 %v804, %v849
      %v870 = vsub.f32 %v805, %v856
      %v871 = vsub.f32 %v806, %v863
      %v872 = vmul.f32 %v864, 1.442695
      %v873 = vpow.pop %v872
      %v874 = vmul.f32 %v865, 1.442695
      %v875 = vpow.pop %v874
      %v876 = vmul.f32 %v866, 1.442695
      %v877 = vpow.pop %v876
      %v878 = vmul.f32 %v867, 1.442695
      %v879 = vpow.pop %v878
      %v880 = vmul.f32 %v868, 1.442695
      %v881 = vpow.pop %v880
      %v882 = vmul.f32 %v869, 1.442695
      %v883 = vpow.pop %v882
      %v884 = vmul.f32 %v870, 1.442695
      %v885 = vpow.pop %v884
      %v886 = vmul.f32 %v871, 1.442695
      %v887 = vpow.pop %v886
      %v888 = vsel %vm807, %v873, 0.0
      %v889 = vrot.slane %v888, 4
      %v890 = vadd.f32 %v888, %v889
      %v891 = vrot.slane %v890, 2
      %v892 = vadd.f32 %v890, %v891
      %v893 = vrot.slane %v892, 1
      %v894 = vadd.f32 %v892, %v893
      %v895 = vsel %vm807, %v875, 0.0
      %v896 = vrot.slane %v895, 4
      %v897 = vadd.f32 %v895, %v896
      %v898 = vrot.slane %v897, 2
      %v899 = vadd.f32 %v897, %v898
      %v900 = vrot.slane %v899, 1
      %v901 = vadd.f32 %v899, %v900
      %v902 = vsel %vm807, %v877, 0.0
      %v903 = vrot.slane %v902, 4
      %v904 = vadd.f32 %v902, %v903
      %v905 = vrot.slane %v904, 2
      %v906 = vadd.f32 %v904, %v905
      %v907 = vrot.slane %v906, 1
      %v908 = vadd.f32 %v906, %v907
      %v909 = vsel %vm807, %v879, 0.0
      %v910 = vrot.slane %v909, 4
      %v911 = vadd.f32 %v909, %v910
      %v912 = vrot.slane %v911, 2
      %v913 = vadd.f32 %v911, %v912
      %v914 = vrot.slane %v913, 1
      %v915 = vadd.f32 %v913, %v914
      %v916 = vsel %vm807, %v881, 0.0
      %v917 = vrot.slane %v916, 4
      %v918 = vadd.f32 %v916, %v917
      %v919 = vrot.slane %v918, 2
      %v920 = vadd.f32 %v918, %v919
      %v921 = vrot.slane %v920, 1
      %v922 = vadd.f32 %v920, %v921
      %v923 = vsel %vm807, %v883, 0.0
      %v924 = vrot.slane %v923, 4
      %v925 = vadd.f32 %v923, %v924
      %v926 = vrot.slane %v925, 2
      %v927 = vadd.f32 %v925, %v926
      %v928 = vrot.slane %v927, 1
      %v929 = vadd.f32 %v927, %v928
      %v930 = vsel %vm807, %v885, 0.0
      %v931 = vrot.slane %v930, 4
      %v932 = vadd.f32 %v930, %v931
      %v933 = vrot.slane %v932, 2
      %v934 = vadd.f32 %v932, %v933
      %v935 = vrot.slane %v934, 1
      %v936 = vadd.f32 %v934, %v935
      %v937 = vsel %vm807, %v887, 0.0
      %v938 = vrot.slane %v937, 4
      %v939 = vadd.f32 %v937, %v938
      %v940 = vrot.slane %v939, 2
      %v941 = vadd.f32 %v939, %v940
      %v942 = vrot.slane %v941, 1
      %v943 = vadd.f32 %v941, %v942
      %v944 = vlog2.pop %v894
      %v945 = vmul.f32 %v944, 0.6931472
      %v946 = vlog2.pop %v901
      %v947 = vmul.f32 %v946, 0.6931472
      %v948 = vlog2.pop %v908
      %v949 = vmul.f32 %v948, 0.6931472
      %v950 = vlog2.pop %v915
      %v951 = vmul.f32 %v950, 0.6931472
      %v952 = vlog2.pop %v922
      %v953 = vmul.f32 %v952, 0.6931472
      %v954 = vlog2.pop %v929
      %v955 = vmul.f32 %v954, 0.6931472
      %v956 = vlog2.pop %v936
      %v957 = vmul.f32 %v956, 0.6931472
      %v958 = vlog2.pop %v943
      %v959 = vmul.f32 %v958, 0.6931472
      %v960 = vadd.f32 %v945, %v814
      %v961 = vadd.f32 %v947, %v821
      %v962 = vadd.f32 %v949, %v828
      %v963 = vadd.f32 %v951, %v835
      %v964 = vadd.f32 %v953, %v842
      %v965 = vadd.f32 %v955, %v849
      %v966 = vadd.f32 %v957, %v856
      %v967 = vadd.f32 %v959, %v863
      %v968 = vsub.f32 %v799, %v960
      %v969 = vsub.f32 %v800, %v961
      %v970 = vsub.f32 %v801, %v962
      %v971 = vsub.f32 %v802, %v963
      %v972 = vsub.f32 %v803, %v964
      %v973 = vsub.f32 %v804, %v965
      %v974 = vsub.f32 %v805, %v966
      %v975 = vsub.f32 %v806, %v967
      %v976 = vmul.f32 %v968, 1.442695
      %v977 = vpow.pop %v976
      %v978 = vmul.f32 %v969, 1.442695
      %v979 = vpow.pop %v978
      %v980 = vmul.f32 %v970, 1.442695
      %v981 = vpow.pop %v980
      %v982 = vmul.f32 %v971, 1.442695
      %v983 = vpow.pop %v982
      %v984 = vmul.f32 %v972, 1.442695
      %v985 = vpow.pop %v984
      %v986 = vmul.f32 %v973, 1.442695
      %v987 = vpow.pop %v986
      %v988 = vmul.f32 %v974, 1.442695
      %v989 = vpow.pop %v988
      %v990 = vmul.f32 %v975, 1.442695
      %v991 = vpow.pop %v990
      %v992 = vsel %vm807, %v977, 0.0
      %v993 = vsel %vm807, %v981, 0.0
      %v994 = vadd.f32 %v992, %v993
      %v995 = vsel %vm807, %v985, 0.0
      %v996 = vadd.f32 %v994, %v995
      %v997 = vsel %vm807, %v989, 0.0
      %v998 = vadd.f32 %v996, %v997
      %v999 = vsel %vm807, %v979, 0.0
      %v1000 = vsel %vm807, %v983, 0.0
      %v1001 = vadd.f32 %v999, %v1000
      %v1002 = vsel %vm807, %v987, 0.0
      %v1003 = vadd.f32 %v1001, %v1002
      %v1004 = vsel %vm807, %v991, 0.0
      %v1005 = vadd.f32 %v1003, %v1004
      %v1006 = vmul.f32 %v998, 0.25
      %v1007 = vmul.f32 %v1005, 0.25
      %v1008 = vmul.f32 %v977, %v968
      %v1009 = vmul.f32 %v979, %v969
      %v1010 = vmul.f32 %v981, %v970
      %v1011 = vmul.f32 %v983, %v971
      %v1012 = vmul.f32 %v985, %v972
      %v1013 = vmul.f32 %v987, %v973
      %v1014 = vmul.f32 %v989, %v974
      %v1015 = vmul.f32 %v991, %v975
      %v1016 = vsel %vm807, %v1008, 0.0
      %v1017 = vsel %vm807, %v1010, 0.0
      %v1018 = vadd.f32 %v1016, %v1017
      %v1019 = vsel %vm807, %v1012, 0.0
      %v1020 = vadd.f32 %v1018, %v1019
      %v1021 = vsel %vm807, %v1014, 0.0
      %v1022 = vadd.f32 %v1020, %v1021
      %v1023 = vsel %vm807, %v1009, 0.0
      %v1024 = vsel %vm807, %v1011, 0.0
      %v1025 = vadd.f32 %v1023, %v1024
      %v1026 = vsel %vm807, %v1013, 0.0
      %v1027 = vadd.f32 %v1025, %v1026
      %v1028 = vsel %vm807, %v1015, 0.0
      %v1029 = vadd.f32 %v1027, %v1028
      %v1030 = vsub.f32 0.0, %v1022
      %v1031 = vsub.f32 0.0, %v1029
      %v1032 = vmul.f32 %v1030, 0.25
      %v1033 = vmul.f32 %v1031, 0.25
      %v1034 = vmul.f32 %v977, %v977
      %v1035 = vmul.f32 %v979, %v979
      %v1036 = vmul.f32 %v981, %v981
      %v1037 = vmul.f32 %v983, %v983
      %v1038 = vmul.f32 %v985, %v985
      %v1039 = vmul.f32 %v987, %v987
      %v1040 = vmul.f32 %v989, %v989
      %v1041 = vmul.f32 %v991, %v991
      %v1042 = vsub.f32 %v977, %v1034
      %v1043 = vsub.f32 %v979, %v1035
      %v1044 = vsub.f32 %v981, %v1036
      %v1045 = vsub.f32 %v983, %v1037
      %v1046 = vsub.f32 %v985, %v1038
      %v1047 = vsub.f32 %v987, %v1039
      %v1048 = vsub.f32 %v989, %v1040
      %v1049 = vsub.f32 %v991, %v1041
      %v1050 = vsel %vm807, %v1042, 0.0
      %v1051 = vsel %vm807, %v1044, 0.0
      %v1052 = vadd.f32 %v1050, %v1051
      %v1053 = vsel %vm807, %v1046, 0.0
      %v1054 = vadd.f32 %v1052, %v1053
      %v1055 = vsel %vm807, %v1048, 0.0
      %v1056 = vadd.f32 %v1054, %v1055
      %v1057 = vsel %vm807, %v1043, 0.0
      %v1058 = vsel %vm807, %v1045, 0.0
      %v1059 = vadd.f32 %v1057, %v1058
      %v1060 = vsel %vm807, %v1047, 0.0
      %v1061 = vadd.f32 %v1059, %v1060
      %v1062 = vsel %vm807, %v1049, 0.0
      %v1063 = vadd.f32 %v1061, %v1062
      %v1064 = vmul.f32 %v1056, 0.25
      %v1065 = vmul.f32 %v1063, 0.25
      %v1066 = vsub.f32 %v977, %v1006
      %v1067 = vsub.f32 %v979, %v1007
      %v1068 = vsub.f32 %v981, %v1006
      %v1069 = vsub.f32 %v983, %v1007
      %v1070 = vsub.f32 %v985, %v1006
      %v1071 = vsub.f32 %v987, %v1007
      %v1072 = vsub.f32 %v989, %v1006
      %v1073 = vsub.f32 %v991, %v1007
      %v1074 = vmul.f32 %v1066, %v1066
      %v1075 = vmul.f32 %v1067, %v1067
      %v1076 = vmul.f32 %v1068, %v1068
      %v1077 = vmul.f32 %v1069, %v1069
      %v1078 = vmul.f32 %v1070, %v1070
      %v1079 = vmul.f32 %v1071, %v1071
      %v1080 = vmul.f32 %v1072, %v1072
      %v1081 = vmul.f32 %v1073, %v1073
      %v1082 = vsel %vm807, %v1074, 0.0
      %v1083 = vsel %vm807, %v1076, 0.0
      %v1084 = vadd.f32 %v1082, %v1083
      %v1085 = vsel %vm807, %v1078, 0.0
      %v1086 = vadd.f32 %v1084, %v1085
      %v1087 = vsel %vm807, %v1080, 0.0
      %v1088 = vadd.f32 %v1086, %v1087
      %v1089 = vsel %vm807, %v1075, 0.0
      %v1090 = vsel %vm807, %v1077, 0.0
      %v1091 = vadd.f32 %v1089, %v1090
      %v1092 = vsel %vm807, %v1079, 0.0
      %v1093 = vadd.f32 %v1091, %v1092
      %v1094 = vsel %vm807, %v1081, 0.0
      %v1095 = vadd.f32 %v1093, %v1094
      %v1096 = vmul.f32 %v1088, 0.25
      %v1097 = vmul.f32 %v1095, 0.25
      %v1098 = vadd.f32 %v1064, %v1096
      %v1099 = vadd.f32 %v1065, %v1097
      %v1100 = vadd.f32 %v1098, 1e-10
      %v1101 = vadd.f32 %v1099, 1e-10
      %v1102 = vrcp.pop %v1100
      %v1103 = vmul.f32 %v1006, %v1102
      %v1104 = vrcp.pop %v1101
      %v1105 = vmul.f32 %v1007, %v1104
      %v1106 = vadd.f32 %v1006, 1e-10
      %v1107 = vadd.f32 %v1007, 1e-10
      %v1108 = vrcp.pop %v1106
      %v1109 = vmul.f32 %v1098, %v1108
      %v1110 = vrcp.pop %v1107
      %v1111 = vmul.f32 %v1099, %v1110
      %v1112 = vrsqrt.pop %v1100
      %v1113 = vmul.f32 %v1100, %v1112
      %vm1114 = vcmp.eq.f32.partialorder %v1100, inf
      %v1115 = vsel %vm1114, %v1100, %v1113
      %vm1116 = vcmp.eq.f32.partialorder %v1100, 0.0
      %v1117 = vand.u32 %v1100, 2147483648
      %v1118 = vsel %vm1116, %v1117, %v1115
      %v1119 = vrsqrt.pop %v1101
      %v1120 = vmul.f32 %v1101, %v1119
      %vm1121 = vcmp.eq.f32.partialorder %v1101, inf
      %v1122 = vsel %vm1121, %v1101, %v1120
      %vm1123 = vcmp.eq.f32.partialorder %v1101, 0.0
      %v1124 = vand.u32 %v1101, 2147483648
      %v1125 = vsel %vm1123, %v1124, %v1122
      %v1126 = vmul.f32 %v1118, %v1108
      %v1127 = vmul.f32 %v1125, %v1110
      %v1128 = vmul.f32 %v1032, %v1108
      %v1129 = vmul.f32 %v1033, %v1110
      %v1130 = vadd.f32 %v1032, 1e-10
      %v1131 = vadd.f32 %v1033, 1e-10
      %v1132 = vrcp.pop %v1130
      %v1133 = vmul.f32 %v1006, %v1132
      %v1134 = vrcp.pop %v1131
      %v1135 = vmul.f32 %v1007, %v1134
      %v1138 = vcombine.low %v1006, %v1007
      %1140 = vst [vmem:[%s599] sm:$0xff] %v1138
      %v1143 = vcombine.low %v1032, %v1033
      %1145 = vst [vmem:[%s604] sm:$0xff] %v1143
      %v1148 = vcombine.low %v1064, %v1065
      %1150 = vst [vmem:[%s609] sm:$0xff] %v1148
      %v1153 = vcombine.low %v1096, %v1097
      %1155 = vst [vmem:[%s614] sm:$0xff] %v1153
      %v1158 = vcombine.low %v1098, %v1099
      %1160 = vst [vmem:[%s619] sm:$0xff] %v1158
      %v1163 = vcombine.low %v1103, %v1105
      %1165 = vst [vmem:[%s624] sm:$0xff] %v1163
      %v1168 = vcombine.low %v1109, %v1111
      %1170 = vst [vmem:[%s629] sm:$0xff] %v1168
      %v1173 = vcombine.low %v1126, %v1127
      %1175 = vst [vmem:[%s634] sm:$0xff] %v1173
      %v1178 = vcombine.low %v1128, %v1129
      %1180 = vst [vmem:[%s639] sm:$0xff] %v1178
      %v1183 = vcombine.low %v1133, %v1135
      %1185 = vst [vmem:[%s644] sm:$0xff] %v1183
      %v1186 = vld [vmem:[%s2] sm:$0xff]
      %v1187 = vld [vmem:[%s2 + $0x8] sm:$0x3]
      %v1188 = vld [vmem:[%s3] sm:$0xff]
      %v1189 = vld [vmem:[%s3 + $0x8] sm:$0x3]
      %v1190 = vld [vmem:[%s4] sm:$0xff]
      %v1191 = vld [vmem:[%s4 + $0x8] sm:$0x3]
      %v1194 = vcombine.high %v1186, %v1186
      %v1196 = vunpack.c.l.s4 1966171168
      %v1197 = vunpack.c.0.s8 %v1196
      %v1198 = vlaneseq
      %v1199 = vshrl.u32 %v1198, 7
      %v1200 = vsub.s32 %v1197, %v1199
      %v1201 = vrot.slane %v1186, %v1200
      %v1203 = vunpack.c.l.s4 1966171168
      %v1204 = vunpack.c.0.s8 %v1203
      %v1205 = vlaneseq
      %v1206 = vshrl.u32 %v1205, 7
      %v1207 = vsub.s32 %v1204, %v1206
      %v1208 = vrot.slane %v1194, %v1207
      %v1209 = vcombine.high %v1201, %v1201
      %v1210 = vcombine.high %v1208, %v1208
      %v1212 = vunpack.c.l.s4 1966171168
      %v1213 = vunpack.c.0.s8 %v1212
      %v1214 = vlaneseq
      %v1215 = vshrl.u32 %v1214, 7
      %v1216 = vsub.s32 %v1213, %v1215
      %v1217 = vrot.slane %v1201, %v1216
      %v1219 = vunpack.c.l.s4 1966171168
      %v1220 = vunpack.c.0.s8 %v1219
      %v1221 = vlaneseq
      %v1222 = vshrl.u32 %v1221, 7
      %v1223 = vsub.s32 %v1220, %v1222
      %v1224 = vrot.slane %v1208, %v1223
      %v1226 = vunpack.c.l.s4 1966171168
      %v1227 = vunpack.c.0.s8 %v1226
      %v1228 = vlaneseq
      %v1229 = vshrl.u32 %v1228, 7
      %v1230 = vsub.s32 %v1227, %v1229
      %v1231 = vrot.slane %v1209, %v1230
      %v1233 = vunpack.c.l.s4 1966171168
      %v1234 = vunpack.c.0.s8 %v1233
      %v1235 = vlaneseq
      %v1236 = vshrl.u32 %v1235, 7
      %v1237 = vsub.s32 %v1234, %v1236
      %v1238 = vrot.slane %v1210, %v1237
      %v1239 = vcombine.high %v1217, %v1217
      %v1240 = vcombine.high %v1224, %v1224
      %v1241 = vcombine.high %v1231, %v1231
      %v1242 = vcombine.high %v1238, %v1238
      %v1244 = vunpack.c.l.s4 1966171168
      %v1245 = vunpack.c.0.s8 %v1244
      %v1246 = vlaneseq
      %v1247 = vshrl.u32 %v1246, 7
      %v1248 = vsub.s32 %v1245, %v1247
      %v1249 = vrot.slane %v1187, %v1248
      %v1250 = vcombine.high %v1249, %v1249
      %v1252 = vunpack.c.l.s4 1966171168
      %v1253 = vunpack.c.0.s8 %v1252
      %v1254 = vlaneseq
      %v1255 = vshrl.u32 %v1254, 7
      %v1256 = vsub.s32 %v1253, %v1255
      %v1257 = vrot.slane %v1249, %v1256
      %v1259 = vunpack.c.l.s4 1966171168
      %v1260 = vunpack.c.0.s8 %v1259
      %v1261 = vlaneseq
      %v1262 = vshrl.u32 %v1261, 7
      %v1263 = vsub.s32 %v1260, %v1262
      %v1264 = vrot.slane %v1250, %v1263
      %v1265 = vlaneseq
      %v1266 = vshrl.u32 %v1265, 7
      %v1267 = vsub.s32 0, %v1266
      %v1268 = vrot.slane %v1217, %v1267
      %v1269 = vlaneseq
      %v1270 = vshrl.u32 %v1269, 7
      %v1271 = vsub.s32 0, %v1270
      %v1272 = vrot.slane %v1231, %v1271
      %v1273 = vlaneseq
      %v1274 = vshrl.u32 %v1273, 7
      %v1275 = vsub.s32 0, %v1274
      %v1276 = vrot.slane %v1239, %v1275
      %v1277 = vlaneseq
      %v1278 = vshrl.u32 %v1277, 7
      %v1279 = vsub.s32 0, %v1278
      %v1280 = vrot.slane %v1241, %v1279
      %v1281 = vlaneseq
      %v1282 = vshrl.u32 %v1281, 7
      %v1283 = vsub.s32 0, %v1282
      %v1284 = vrot.slane %v1224, %v1283
      %v1285 = vlaneseq
      %v1286 = vshrl.u32 %v1285, 7
      %v1287 = vsub.s32 0, %v1286
      %v1288 = vrot.slane %v1238, %v1287
      %v1289 = vlaneseq
      %v1290 = vshrl.u32 %v1289, 7
      %v1291 = vsub.s32 0, %v1290
      %v1292 = vrot.slane %v1240, %v1291
      %v1293 = vlaneseq
      %v1294 = vshrl.u32 %v1293, 7
      %v1295 = vsub.s32 0, %v1294
      %v1296 = vrot.slane %v1242, %v1295
      %v1297 = vlaneseq
      %v1298 = vshrl.u32 %v1297, 7
      %v1299 = vsub.s32 0, %v1298
      %v1300 = vrot.slane %v1257, %v1299
      %v1301 = vlaneseq
      %v1302 = vshrl.u32 %v1301, 7
      %v1303 = vsub.s32 0, %v1302
      %v1304 = vrot.slane %v1264, %v1303
      %1305 = vset.pattern.permute.xlu0 0
      %1306 = vperm.xlu0 %1305, %v1268
      %v1307 = vpop.permute.xlu0 %1306
      %1309 = vset.pattern.permute.xlu0 0
      %1310 = vperm.xlu0 %1309, %v1272
      %v1311 = vpop.permute.xlu0 %1310
      %1313 = vset.pattern.permute.xlu0 0
      %1314 = vperm.xlu0 %1313, %v1276
      %v1315 = vpop.permute.xlu0 %1314
      %1317 = vset.pattern.permute.xlu0 0
      %1318 = vperm.xlu0 %1317, %v1280
      %v1319 = vpop.permute.xlu0 %1318
      %1321 = vset.pattern.permute.xlu0 0
      %1322 = vperm.xlu0 %1321, %v1284
      %v1323 = vpop.permute.xlu0 %1322
      %1325 = vset.pattern.permute.xlu0 0
      %1326 = vperm.xlu0 %1325, %v1288
      %v1327 = vpop.permute.xlu0 %1326
      %1329 = vset.pattern.permute.xlu0 0
      %1330 = vperm.xlu0 %1329, %v1292
      %v1331 = vpop.permute.xlu0 %1330
      %1333 = vset.pattern.permute.xlu0 0
      %1334 = vperm.xlu0 %1333, %v1296
      %v1335 = vpop.permute.xlu0 %1334
      %1337 = vset.pattern.permute.xlu0 0
      %1338 = vperm.xlu0 %1337, %v1300
      %v1339 = vpop.permute.xlu0 %1338
      %1341 = vset.pattern.permute.xlu0 0
      %1342 = vperm.xlu0 %1341, %v1304
      %v1343 = vpop.permute.xlu0 %1342
      %v1345 = vmul.f32 %v1307, %v1126
      %v1346 = vmul.f32 %v1307, %v1127
      %v1347 = vmul.f32 %v1311, %v1126
      %v1348 = vmul.f32 %v1311, %v1127
      %v1349 = vmul.f32 %v1315, %v1126
      %v1350 = vmul.f32 %v1315, %v1127
      %v1351 = vmul.f32 %v1319, %v1126
      %v1352 = vmul.f32 %v1319, %v1127
      %v1353 = vmul.f32 %v1323, %v1126
      %v1354 = vmul.f32 %v1323, %v1127
      %v1355 = vmul.f32 %v1327, %v1126
      %v1356 = vmul.f32 %v1327, %v1127
      %v1357 = vmul.f32 %v1331, %v1126
      %v1358 = vmul.f32 %v1331, %v1127
      %v1359 = vmul.f32 %v1335, %v1126
      %v1360 = vmul.f32 %v1335, %v1127
      %v1361 = vmul.f32 %v1339, %v1126
      %v1362 = vmul.f32 %v1339, %v1127
      %v1363 = vmul.f32 %v1343, %v1126
      %v1364 = vmul.f32 %v1343, %v1127
      %1365 = vset.pattern.permute.xlu0 1
      %1366 = vperm.xlu0 %1365, %v1268
      %v1367 = vpop.permute.xlu0 %1366
      %1369 = vset.pattern.permute.xlu0 1
      %1370 = vperm.xlu0 %1369, %v1272
      %v1371 = vpop.permute.xlu0 %1370
      %1373 = vset.pattern.permute.xlu0 1
      %1374 = vperm.xlu0 %1373, %v1276
      %v1375 = vpop.permute.xlu0 %1374
      %1377 = vset.pattern.permute.xlu0 1
      %1378 = vperm.xlu0 %1377, %v1280
      %v1379 = vpop.permute.xlu0 %1378
      %1381 = vset.pattern.permute.xlu0 1
      %1382 = vperm.xlu0 %1381, %v1284
      %v1383 = vpop.permute.xlu0 %1382
      %1385 = vset.pattern.permute.xlu0 1
      %1386 = vperm.xlu0 %1385, %v1288
      %v1387 = vpop.permute.xlu0 %1386
      %1389 = vset.pattern.permute.xlu0 1
      %1390 = vperm.xlu0 %1389, %v1292
      %v1391 = vpop.permute.xlu0 %1390
      %1393 = vset.pattern.permute.xlu0 1
      %1394 = vperm.xlu0 %1393, %v1296
      %v1395 = vpop.permute.xlu0 %1394
      %1397 = vset.pattern.permute.xlu0 1
      %1398 = vperm.xlu0 %1397, %v1300
      %v1399 = vpop.permute.xlu0 %1398
      %1401 = vset.pattern.permute.xlu0 1
      %1402 = vperm.xlu0 %1401, %v1304
      %v1403 = vpop.permute.xlu0 %1402
      %v1405 = vmul.f32 %v1367, %v1032
      %v1406 = vmul.f32 %v1367, %v1033
      %v1407 = vmul.f32 %v1371, %v1032
      %v1408 = vmul.f32 %v1371, %v1033
      %v1409 = vmul.f32 %v1375, %v1032
      %v1410 = vmul.f32 %v1375, %v1033
      %v1411 = vmul.f32 %v1379, %v1032
      %v1412 = vmul.f32 %v1379, %v1033
      %v1413 = vmul.f32 %v1383, %v1032
      %v1414 = vmul.f32 %v1383, %v1033
      %v1415 = vmul.f32 %v1387, %v1032
      %v1416 = vmul.f32 %v1387, %v1033
      %v1417 = vmul.f32 %v1391, %v1032
      %v1418 = vmul.f32 %v1391, %v1033
      %v1419 = vmul.f32 %v1395, %v1032
      %v1420 = vmul.f32 %v1395, %v1033
      %v1421 = vmul.f32 %v1399, %v1032
      %v1422 = vmul.f32 %v1399, %v1033
      %v1423 = vmul.f32 %v1403, %v1032
      %v1424 = vmul.f32 %v1403, %v1033
      %v1425 = vadd.f32 %v1345, %v1405
      %v1426 = vadd.f32 %v1346, %v1406
      %v1427 = vadd.f32 %v1347, %v1407
      %v1428 = vadd.f32 %v1348, %v1408
      %v1429 = vadd.f32 %v1349, %v1409
      %v1430 = vadd.f32 %v1350, %v1410
      %v1431 = vadd.f32 %v1351, %v1411
      %v1432 = vadd.f32 %v1352, %v1412
      %v1433 = vadd.f32 %v1353, %v1413
      %v1434 = vadd.f32 %v1354, %v1414
      %v1435 = vadd.f32 %v1355, %v1415
      %v1436 = vadd.f32 %v1356, %v1416
      %v1437 = vadd.f32 %v1357, %v1417
      %v1438 = vadd.f32 %v1358, %v1418
      %v1439 = vadd.f32 %v1359, %v1419
      %v1440 = vadd.f32 %v1360, %v1420
      %v1441 = vadd.f32 %v1361, %v1421
      %v1442 = vadd.f32 %v1362, %v1422
      %v1443 = vadd.f32 %v1363, %v1423
      %v1444 = vadd.f32 %v1364, %v1424
      %1445 = vset.pattern.permute.xlu0 2
      %1446 = vperm.xlu0 %1445, %v1268
      %v1447 = vpop.permute.xlu0 %1446
      %1449 = vset.pattern.permute.xlu0 2
      %1450 = vperm.xlu0 %1449, %v1272
      %v1451 = vpop.permute.xlu0 %1450
      %1453 = vset.pattern.permute.xlu0 2
      %1454 = vperm.xlu0 %1453, %v1276
      %v1455 = vpop.permute.xlu0 %1454
      %1457 = vset.pattern.permute.xlu0 2
      %1458 = vperm.xlu0 %1457, %v1280
      %v1459 = vpop.permute.xlu0 %1458
      %1461 = vset.pattern.permute.xlu0 2
      %1462 = vperm.xlu0 %1461, %v1284
      %v1463 = vpop.permute.xlu0 %1462
      %1465 = vset.pattern.permute.xlu0 2
      %1466 = vperm.xlu0 %1465, %v1288
      %v1467 = vpop.permute.xlu0 %1466
      %1469 = vset.pattern.permute.xlu0 2
      %1470 = vperm.xlu0 %1469, %v1292
      %v1471 = vpop.permute.xlu0 %1470
      %1473 = vset.pattern.permute.xlu0 2
      %1474 = vperm.xlu0 %1473, %v1296
      %v1475 = vpop.permute.xlu0 %1474
      %1477 = vset.pattern.permute.xlu0 2
      %1478 = vperm.xlu0 %1477, %v1300
      %v1479 = vpop.permute.xlu0 %1478
      %1481 = vset.pattern.permute.xlu0 2
      %1482 = vperm.xlu0 %1481, %v1304
      %v1483 = vpop.permute.xlu0 %1482
      %v1485 = vmul.f32 %v1447, %v1006
      %v1486 = vmul.f32 %v1447, %v1007
      %v1487 = vmul.f32 %v1451, %v1006
      %v1488 = vmul.f32 %v1451, %v1007
      %v1489 = vmul.f32 %v1455, %v1006
      %v1490 = vmul.f32 %v1455, %v1007
      %v1491 = vmul.f32 %v1459, %v1006
      %v1492 = vmul.f32 %v1459, %v1007
      %v1493 = vmul.f32 %v1463, %v1006
      %v1494 = vmul.f32 %v1463, %v1007
      %v1495 = vmul.f32 %v1467, %v1006
      %v1496 = vmul.f32 %v1467, %v1007
      %v1497 = vmul.f32 %v1471, %v1006
      %v1498 = vmul.f32 %v1471, %v1007
      %v1499 = vmul.f32 %v1475, %v1006
      %v1500 = vmul.f32 %v1475, %v1007
      %v1501 = vmul.f32 %v1479, %v1006
      %v1502 = vmul.f32 %v1479, %v1007
      %v1503 = vmul.f32 %v1483, %v1006
      %v1504 = vmul.f32 %v1483, %v1007
      %v1505 = vadd.f32 %v1425, %v1485
      %v1506 = vadd.f32 %v1426, %v1486
      %v1507 = vadd.f32 %v1427, %v1487
      %v1508 = vadd.f32 %v1428, %v1488
      %v1509 = vadd.f32 %v1429, %v1489
      %v1510 = vadd.f32 %v1430, %v1490
      %v1511 = vadd.f32 %v1431, %v1491
      %v1512 = vadd.f32 %v1432, %v1492
      %v1513 = vadd.f32 %v1433, %v1493
      %v1514 = vadd.f32 %v1434, %v1494
      %v1515 = vadd.f32 %v1435, %v1495
      %v1516 = vadd.f32 %v1436, %v1496
      %v1517 = vadd.f32 %v1437, %v1497
      %v1518 = vadd.f32 %v1438, %v1498
      %v1519 = vadd.f32 %v1439, %v1499
      %v1520 = vadd.f32 %v1440, %v1500
      %v1521 = vadd.f32 %v1441, %v1501
      %v1522 = vadd.f32 %v1442, %v1502
      %v1523 = vadd.f32 %v1443, %v1503
      %v1524 = vadd.f32 %v1444, %v1504
      %1525 = vset.pattern.permute.xlu0 3
      %1526 = vperm.xlu0 %1525, %v1268
      %v1527 = vpop.permute.xlu0 %1526
      %1529 = vset.pattern.permute.xlu0 3
      %1530 = vperm.xlu0 %1529, %v1272
      %v1531 = vpop.permute.xlu0 %1530
      %1533 = vset.pattern.permute.xlu0 3
      %1534 = vperm.xlu0 %1533, %v1276
      %v1535 = vpop.permute.xlu0 %1534
      %1537 = vset.pattern.permute.xlu0 3
      %1538 = vperm.xlu0 %1537, %v1280
      %v1539 = vpop.permute.xlu0 %1538
      %1541 = vset.pattern.permute.xlu0 3
      %1542 = vperm.xlu0 %1541, %v1284
      %v1543 = vpop.permute.xlu0 %1542
      %1545 = vset.pattern.permute.xlu0 3
      %1546 = vperm.xlu0 %1545, %v1288
      %v1547 = vpop.permute.xlu0 %1546
      %1549 = vset.pattern.permute.xlu0 3
      %1550 = vperm.xlu0 %1549, %v1292
      %v1551 = vpop.permute.xlu0 %1550
      %1553 = vset.pattern.permute.xlu0 3
      %1554 = vperm.xlu0 %1553, %v1296
      %v1555 = vpop.permute.xlu0 %1554
      %1557 = vset.pattern.permute.xlu0 3
      %1558 = vperm.xlu0 %1557, %v1300
      %v1559 = vpop.permute.xlu0 %1558
      %1561 = vset.pattern.permute.xlu0 3
      %1562 = vperm.xlu0 %1561, %v1304
      %v1563 = vpop.permute.xlu0 %1562
      %v1565 = vmul.f32 %v1527, %v1103
      %v1566 = vmul.f32 %v1527, %v1105
      %v1567 = vmul.f32 %v1531, %v1103
      %v1568 = vmul.f32 %v1531, %v1105
      %v1569 = vmul.f32 %v1535, %v1103
      %v1570 = vmul.f32 %v1535, %v1105
      %v1571 = vmul.f32 %v1539, %v1103
      %v1572 = vmul.f32 %v1539, %v1105
      %v1573 = vmul.f32 %v1543, %v1103
      %v1574 = vmul.f32 %v1543, %v1105
      %v1575 = vmul.f32 %v1547, %v1103
      %v1576 = vmul.f32 %v1547, %v1105
      %v1577 = vmul.f32 %v1551, %v1103
      %v1578 = vmul.f32 %v1551, %v1105
      %v1579 = vmul.f32 %v1555, %v1103
      %v1580 = vmul.f32 %v1555, %v1105
      %v1581 = vmul.f32 %v1559, %v1103
      %v1582 = vmul.f32 %v1559, %v1105
      %v1583 = vmul.f32 %v1563, %v1103
      %v1584 = vmul.f32 %v1563, %v1105
      %v1585 = vadd.f32 %v1505, %v1565
      %v1586 = vadd.f32 %v1506, %v1566
      %v1587 = vadd.f32 %v1507, %v1567
      %v1588 = vadd.f32 %v1508, %v1568
      %v1589 = vadd.f32 %v1509, %v1569
      %v1590 = vadd.f32 %v1510, %v1570
      %v1591 = vadd.f32 %v1511, %v1571
      %v1592 = vadd.f32 %v1512, %v1572
      %v1593 = vadd.f32 %v1513, %v1573
      %v1594 = vadd.f32 %v1514, %v1574
      %v1595 = vadd.f32 %v1515, %v1575
      %v1596 = vadd.f32 %v1516, %v1576
      %v1597 = vadd.f32 %v1517, %v1577
      %v1598 = vadd.f32 %v1518, %v1578
      %v1599 = vadd.f32 %v1519, %v1579
      %v1600 = vadd.f32 %v1520, %v1580
      %v1601 = vadd.f32 %v1521, %v1581
      %v1602 = vadd.f32 %v1522, %v1582
      %v1603 = vadd.f32 %v1523, %v1583
      %v1604 = vadd.f32 %v1524, %v1584
      %1605 = vset.pattern.permute.xlu0 4
      %1606 = vperm.xlu0 %1605, %v1268
      %v1607 = vpop.permute.xlu0 %1606
      %1609 = vset.pattern.permute.xlu0 4
      %1610 = vperm.xlu0 %1609, %v1272
      %v1611 = vpop.permute.xlu0 %1610
      %1613 = vset.pattern.permute.xlu0 4
      %1614 = vperm.xlu0 %1613, %v1276
      %v1615 = vpop.permute.xlu0 %1614
      %1617 = vset.pattern.permute.xlu0 4
      %1618 = vperm.xlu0 %1617, %v1280
      %v1619 = vpop.permute.xlu0 %1618
      %1621 = vset.pattern.permute.xlu0 4
      %1622 = vperm.xlu0 %1621, %v1284
      %v1623 = vpop.permute.xlu0 %1622
      %1625 = vset.pattern.permute.xlu0 4
      %1626 = vperm.xlu0 %1625, %v1288
      %v1627 = vpop.permute.xlu0 %1626
      %1629 = vset.pattern.permute.xlu0 4
      %1630 = vperm.xlu0 %1629, %v1292
      %v1631 = vpop.permute.xlu0 %1630
      %1633 = vset.pattern.permute.xlu0 4
      %1634 = vperm.xlu0 %1633, %v1296
      %v1635 = vpop.permute.xlu0 %1634
      %1637 = vset.pattern.permute.xlu0 4
      %1638 = vperm.xlu0 %1637, %v1300
      %v1639 = vpop.permute.xlu0 %1638
      %1641 = vset.pattern.permute.xlu0 4
      %1642 = vperm.xlu0 %1641, %v1304
      %v1643 = vpop.permute.xlu0 %1642
      %v1645 = vmul.f32 %v1607, %v1098
      %v1646 = vmul.f32 %v1607, %v1099
      %v1647 = vmul.f32 %v1611, %v1098
      %v1648 = vmul.f32 %v1611, %v1099
      %v1649 = vmul.f32 %v1615, %v1098
      %v1650 = vmul.f32 %v1615, %v1099
      %v1651 = vmul.f32 %v1619, %v1098
      %v1652 = vmul.f32 %v1619, %v1099
      %v1653 = vmul.f32 %v1623, %v1098
      %v1654 = vmul.f32 %v1623, %v1099
      %v1655 = vmul.f32 %v1627, %v1098
      %v1656 = vmul.f32 %v1627, %v1099
      %v1657 = vmul.f32 %v1631, %v1098
      %v1658 = vmul.f32 %v1631, %v1099
      %v1659 = vmul.f32 %v1635, %v1098
      %v1660 = vmul.f32 %v1635, %v1099
      %v1661 = vmul.f32 %v1639, %v1098
      %v1662 = vmul.f32 %v1639, %v1099
      %v1663 = vmul.f32 %v1643, %v1098
      %v1664 = vmul.f32 %v1643, %v1099
      %v1665 = vadd.f32 %v1585, %v1645
      %v1666 = vadd.f32 %v1586, %v1646
      %v1667 = vadd.f32 %v1587, %v1647
      %v1668 = vadd.f32 %v1588, %v1648
      %v1669 = vadd.f32 %v1589, %v1649
      %v1670 = vadd.f32 %v1590, %v1650
      %v1671 = vadd.f32 %v1591, %v1651
      %v1672 = vadd.f32 %v1592, %v1652
      %v1673 = vadd.f32 %v1593, %v1653
      %v1674 = vadd.f32 %v1594, %v1654
      %v1675 = vadd.f32 %v1595, %v1655
      %v1676 = vadd.f32 %v1596, %v1656
      %v1677 = vadd.f32 %v1597, %v1657
      %v1678 = vadd.f32 %v1598, %v1658
      %v1679 = vadd.f32 %v1599, %v1659
      %v1680 = vadd.f32 %v1600, %v1660
      %v1681 = vadd.f32 %v1601, %v1661
      %v1682 = vadd.f32 %v1602, %v1662
      %v1683 = vadd.f32 %v1603, %v1663
      %v1684 = vadd.f32 %v1604, %v1664
      %v1687 = vcombine.high %v1188, %v1188
      %v1689 = vunpack.c.l.s4 1966171168
      %v1690 = vunpack.c.0.s8 %v1689
      %v1691 = vlaneseq
      %v1692 = vshrl.u32 %v1691, 7
      %v1693 = vsub.s32 %v1690, %v1692
      %v1694 = vrot.slane %v1188, %v1693
      %v1696 = vunpack.c.l.s4 1966171168
      %v1697 = vunpack.c.0.s8 %v1696
      %v1698 = vlaneseq
      %v1699 = vshrl.u32 %v1698, 7
      %v1700 = vsub.s32 %v1697, %v1699
      %v1701 = vrot.slane %v1687, %v1700
      %v1702 = vcombine.high %v1694, %v1694
      %v1703 = vcombine.high %v1701, %v1701
      %v1705 = vunpack.c.l.s4 1966171168
      %v1706 = vunpack.c.0.s8 %v1705
      %v1707 = vlaneseq
      %v1708 = vshrl.u32 %v1707, 7
      %v1709 = vsub.s32 %v1706, %v1708
      %v1710 = vrot.slane %v1694, %v1709
      %v1712 = vunpack.c.l.s4 1966171168
      %v1713 = vunpack.c.0.s8 %v1712
      %v1714 = vlaneseq
      %v1715 = vshrl.u32 %v1714, 7
      %v1716 = vsub.s32 %v1713, %v1715
      %v1717 = vrot.slane %v1701, %v1716
      %v1719 = vunpack.c.l.s4 1966171168
      %v1720 = vunpack.c.0.s8 %v1719
      %v1721 = vlaneseq
      %v1722 = vshrl.u32 %v1721, 7
      %v1723 = vsub.s32 %v1720, %v1722
      %v1724 = vrot.slane %v1702, %v1723
      %v1726 = vunpack.c.l.s4 1966171168
      %v1727 = vunpack.c.0.s8 %v1726
      %v1728 = vlaneseq
      %v1729 = vshrl.u32 %v1728, 7
      %v1730 = vsub.s32 %v1727, %v1729
      %v1731 = vrot.slane %v1703, %v1730
      %v1732 = vcombine.high %v1710, %v1710
      %v1733 = vcombine.high %v1717, %v1717
      %v1734 = vcombine.high %v1724, %v1724
      %v1735 = vcombine.high %v1731, %v1731
      %v1737 = vunpack.c.l.s4 1966171168
      %v1738 = vunpack.c.0.s8 %v1737
      %v1739 = vlaneseq
      %v1740 = vshrl.u32 %v1739, 7
      %v1741 = vsub.s32 %v1738, %v1740
      %v1742 = vrot.slane %v1189, %v1741
      %v1743 = vcombine.high %v1742, %v1742
      %v1745 = vunpack.c.l.s4 1966171168
      %v1746 = vunpack.c.0.s8 %v1745
      %v1747 = vlaneseq
      %v1748 = vshrl.u32 %v1747, 7
      %v1749 = vsub.s32 %v1746, %v1748
      %v1750 = vrot.slane %v1742, %v1749
      %v1752 = vunpack.c.l.s4 1966171168
      %v1753 = vunpack.c.0.s8 %v1752
      %v1754 = vlaneseq
      %v1755 = vshrl.u32 %v1754, 7
      %v1756 = vsub.s32 %v1753, %v1755
      %v1757 = vrot.slane %v1743, %v1756
      %v1758 = vlaneseq
      %v1759 = vshrl.u32 %v1758, 7
      %v1760 = vsub.s32 0, %v1759
      %v1761 = vrot.slane %v1710, %v1760
      %v1762 = vlaneseq
      %v1763 = vshrl.u32 %v1762, 7
      %v1764 = vsub.s32 0, %v1763
      %v1765 = vrot.slane %v1724, %v1764
      %v1766 = vlaneseq
      %v1767 = vshrl.u32 %v1766, 7
      %v1768 = vsub.s32 0, %v1767
      %v1769 = vrot.slane %v1732, %v1768
      %v1770 = vlaneseq
      %v1771 = vshrl.u32 %v1770, 7
      %v1772 = vsub.s32 0, %v1771
      %v1773 = vrot.slane %v1734, %v1772
      %v1774 = vlaneseq
      %v1775 = vshrl.u32 %v1774, 7
      %v1776 = vsub.s32 0, %v1775
      %v1777 = vrot.slane %v1717, %v1776
      %v1778 = vlaneseq
      %v1779 = vshrl.u32 %v1778, 7
      %v1780 = vsub.s32 0, %v1779
      %v1781 = vrot.slane %v1731, %v1780
      %v1782 = vlaneseq
      %v1783 = vshrl.u32 %v1782, 7
      %v1784 = vsub.s32 0, %v1783
      %v1785 = vrot.slane %v1733, %v1784
      %v1786 = vlaneseq
      %v1787 = vshrl.u32 %v1786, 7
      %v1788 = vsub.s32 0, %v1787
      %v1789 = vrot.slane %v1735, %v1788
      %v1790 = vlaneseq
      %v1791 = vshrl.u32 %v1790, 7
      %v1792 = vsub.s32 0, %v1791
      %v1793 = vrot.slane %v1750, %v1792
      %v1794 = vlaneseq
      %v1795 = vshrl.u32 %v1794, 7
      %v1796 = vsub.s32 0, %v1795
      %v1797 = vrot.slane %v1757, %v1796
      %1798 = vset.pattern.permute.xlu0 0
      %1799 = vperm.xlu0 %1798, %v1761
      %v1800 = vpop.permute.xlu0 %1799
      %1802 = vset.pattern.permute.xlu0 0
      %1803 = vperm.xlu0 %1802, %v1765
      %v1804 = vpop.permute.xlu0 %1803
      %1806 = vset.pattern.permute.xlu0 0
      %1807 = vperm.xlu0 %1806, %v1769
      %v1808 = vpop.permute.xlu0 %1807
      %1810 = vset.pattern.permute.xlu0 0
      %1811 = vperm.xlu0 %1810, %v1773
      %v1812 = vpop.permute.xlu0 %1811
      %1814 = vset.pattern.permute.xlu0 0
      %1815 = vperm.xlu0 %1814, %v1777
      %v1816 = vpop.permute.xlu0 %1815
      %1818 = vset.pattern.permute.xlu0 0
      %1819 = vperm.xlu0 %1818, %v1781
      %v1820 = vpop.permute.xlu0 %1819
      %1822 = vset.pattern.permute.xlu0 0
      %1823 = vperm.xlu0 %1822, %v1785
      %v1824 = vpop.permute.xlu0 %1823
      %1826 = vset.pattern.permute.xlu0 0
      %1827 = vperm.xlu0 %1826, %v1789
      %v1828 = vpop.permute.xlu0 %1827
      %1830 = vset.pattern.permute.xlu0 0
      %1831 = vperm.xlu0 %1830, %v1793
      %v1832 = vpop.permute.xlu0 %1831
      %1834 = vset.pattern.permute.xlu0 0
      %1835 = vperm.xlu0 %1834, %v1797
      %v1836 = vpop.permute.xlu0 %1835
      %v1838 = vadd.f32 %v1665, %v1800
      %v1839 = vadd.f32 %v1666, %v1800
      %v1840 = vadd.f32 %v1667, %v1804
      %v1841 = vadd.f32 %v1668, %v1804
      %v1842 = vadd.f32 %v1669, %v1808
      %v1843 = vadd.f32 %v1670, %v1808
      %v1844 = vadd.f32 %v1671, %v1812
      %v1845 = vadd.f32 %v1672, %v1812
      %v1846 = vadd.f32 %v1673, %v1816
      %v1847 = vadd.f32 %v1674, %v1816
      %v1848 = vadd.f32 %v1675, %v1820
      %v1849 = vadd.f32 %v1676, %v1820
      %v1850 = vadd.f32 %v1677, %v1824
      %v1851 = vadd.f32 %v1678, %v1824
      %v1852 = vadd.f32 %v1679, %v1828
      %v1853 = vadd.f32 %v1680, %v1828
      %v1854 = vadd.f32 %v1681, %v1832
      %v1855 = vadd.f32 %v1682, %v1832
      %v1856 = vadd.f32 %v1683, %v1836
      %v1857 = vadd.f32 %v1684, %v1836
      %v1858 = vmax.f32 %v1838, 0.0
      %v1859 = vmax.f32 %v1839, 0.0
      %v1860 = vmax.f32 %v1840, 0.0
      %v1861 = vmax.f32 %v1841, 0.0
      %v1862 = vmax.f32 %v1842, 0.0
      %v1863 = vmax.f32 %v1843, 0.0
      %v1864 = vmax.f32 %v1844, 0.0
      %v1865 = vmax.f32 %v1845, 0.0
      %v1866 = vmax.f32 %v1846, 0.0
      %v1867 = vmax.f32 %v1847, 0.0
      %v1868 = vmax.f32 %v1848, 0.0
      %v1869 = vmax.f32 %v1849, 0.0
      %v1870 = vmax.f32 %v1850, 0.0
      %v1871 = vmax.f32 %v1851, 0.0
      %v1872 = vmax.f32 %v1852, 0.0
      %v1873 = vmax.f32 %v1853, 0.0
      %v1874 = vmax.f32 %v1854, 0.0
      %v1875 = vmax.f32 %v1855, 0.0
      %v1876 = vmax.f32 %v1856, 0.0
      %v1877 = vmax.f32 %v1857, 0.0
      %v1880 = vcombine.high %v1190, %v1190
      %v1882 = vunpack.c.l.s4 1966171168
      %v1883 = vunpack.c.0.s8 %v1882
      %v1884 = vlaneseq
      %v1885 = vshrl.u32 %v1884, 7
      %v1886 = vsub.s32 %v1883, %v1885
      %v1887 = vrot.slane %v1190, %v1886
      %v1889 = vunpack.c.l.s4 1966171168
      %v1890 = vunpack.c.0.s8 %v1889
      %v1891 = vlaneseq
      %v1892 = vshrl.u32 %v1891, 7
      %v1893 = vsub.s32 %v1890, %v1892
      %v1894 = vrot.slane %v1880, %v1893
      %v1895 = vcombine.high %v1887, %v1887
      %v1896 = vcombine.high %v1894, %v1894
      %v1898 = vunpack.c.l.s4 1966171168
      %v1899 = vunpack.c.0.s8 %v1898
      %v1900 = vlaneseq
      %v1901 = vshrl.u32 %v1900, 7
      %v1902 = vsub.s32 %v1899, %v1901
      %v1903 = vrot.slane %v1887, %v1902
      %v1905 = vunpack.c.l.s4 1966171168
      %v1906 = vunpack.c.0.s8 %v1905
      %v1907 = vlaneseq
      %v1908 = vshrl.u32 %v1907, 7
      %v1909 = vsub.s32 %v1906, %v1908
      %v1910 = vrot.slane %v1894, %v1909
      %v1912 = vunpack.c.l.s4 1966171168
      %v1913 = vunpack.c.0.s8 %v1912
      %v1914 = vlaneseq
      %v1915 = vshrl.u32 %v1914, 7
      %v1916 = vsub.s32 %v1913, %v1915
      %v1917 = vrot.slane %v1895, %v1916
      %v1919 = vunpack.c.l.s4 1966171168
      %v1920 = vunpack.c.0.s8 %v1919
      %v1921 = vlaneseq
      %v1922 = vshrl.u32 %v1921, 7
      %v1923 = vsub.s32 %v1920, %v1922
      %v1924 = vrot.slane %v1896, %v1923
      %v1925 = vcombine.high %v1903, %v1903
      %v1926 = vcombine.high %v1910, %v1910
      %v1927 = vcombine.high %v1917, %v1917
      %v1928 = vcombine.high %v1924, %v1924
      %v1930 = vunpack.c.l.s4 1966171168
      %v1931 = vunpack.c.0.s8 %v1930
      %v1932 = vlaneseq
      %v1933 = vshrl.u32 %v1932, 7
      %v1934 = vsub.s32 %v1931, %v1933
      %v1935 = vrot.slane %v1191, %v1934
      %v1936 = vcombine.high %v1935, %v1935
      %v1938 = vunpack.c.l.s4 1966171168
      %v1939 = vunpack.c.0.s8 %v1938
      %v1940 = vlaneseq
      %v1941 = vshrl.u32 %v1940, 7
      %v1942 = vsub.s32 %v1939, %v1941
      %v1943 = vrot.slane %v1935, %v1942
      %v1945 = vunpack.c.l.s4 1966171168
      %v1946 = vunpack.c.0.s8 %v1945
      %v1947 = vlaneseq
      %v1948 = vshrl.u32 %v1947, 7
      %v1949 = vsub.s32 %v1946, %v1948
      %v1950 = vrot.slane %v1936, %v1949
      %v1951 = vlaneseq
      %v1952 = vshrl.u32 %v1951, 7
      %v1953 = vsub.s32 0, %v1952
      %v1954 = vrot.slane %v1903, %v1953
      %v1955 = vlaneseq
      %v1956 = vshrl.u32 %v1955, 7
      %v1957 = vsub.s32 0, %v1956
      %v1958 = vrot.slane %v1917, %v1957
      %v1959 = vlaneseq
      %v1960 = vshrl.u32 %v1959, 7
      %v1961 = vsub.s32 0, %v1960
      %v1962 = vrot.slane %v1925, %v1961
      %v1963 = vlaneseq
      %v1964 = vshrl.u32 %v1963, 7
      %v1965 = vsub.s32 0, %v1964
      %v1966 = vrot.slane %v1927, %v1965
      %v1967 = vlaneseq
      %v1968 = vshrl.u32 %v1967, 7
      %v1969 = vsub.s32 0, %v1968
      %v1970 = vrot.slane %v1910, %v1969
      %v1971 = vlaneseq
      %v1972 = vshrl.u32 %v1971, 7
      %v1973 = vsub.s32 0, %v1972
      %v1974 = vrot.slane %v1924, %v1973
      %v1975 = vlaneseq
      %v1976 = vshrl.u32 %v1975, 7
      %v1977 = vsub.s32 0, %v1976
      %v1978 = vrot.slane %v1926, %v1977
      %v1979 = vlaneseq
      %v1980 = vshrl.u32 %v1979, 7
      %v1981 = vsub.s32 0, %v1980
      %v1982 = vrot.slane %v1928, %v1981
      %v1983 = vlaneseq
      %v1984 = vshrl.u32 %v1983, 7
      %v1985 = vsub.s32 0, %v1984
      %v1986 = vrot.slane %v1943, %v1985
      %v1987 = vlaneseq
      %v1988 = vshrl.u32 %v1987, 7
      %v1989 = vsub.s32 0, %v1988
      %v1990 = vrot.slane %v1950, %v1989
      %1991 = vset.pattern.permute.xlu0 0
      %1992 = vperm.xlu0 %1991, %v1954
      %v1993 = vpop.permute.xlu0 %1992
      %1995 = vset.pattern.permute.xlu0 0
      %1996 = vperm.xlu0 %1995, %v1958
      %v1997 = vpop.permute.xlu0 %1996
      %1999 = vset.pattern.permute.xlu0 0
      %2000 = vperm.xlu0 %1999, %v1962
      %v2001 = vpop.permute.xlu0 %2000
      %2003 = vset.pattern.permute.xlu0 0
      %2004 = vperm.xlu0 %2003, %v1966
      %v2005 = vpop.permute.xlu0 %2004
      %2007 = vset.pattern.permute.xlu0 0
      %2008 = vperm.xlu0 %2007, %v1970
      %v2009 = vpop.permute.xlu0 %2008
      %2011 = vset.pattern.permute.xlu0 0
      %2012 = vperm.xlu0 %2011, %v1974
      %v2013 = vpop.permute.xlu0 %2012
      %2015 = vset.pattern.permute.xlu0 0
      %2016 = vperm.xlu0 %2015, %v1978
      %v2017 = vpop.permute.xlu0 %2016
      %2019 = vset.pattern.permute.xlu0 0
      %2020 = vperm.xlu0 %2019, %v1982
      %v2021 = vpop.permute.xlu0 %2020
      %2023 = vset.pattern.permute.xlu0 0
      %2024 = vperm.xlu0 %2023, %v1986
      %v2025 = vpop.permute.xlu0 %2024
      %2027 = vset.pattern.permute.xlu0 0
      %2028 = vperm.xlu0 %2027, %v1990
      %v2029 = vpop.permute.xlu0 %2028
      %v2031 = vmul.f32 %v1993, %v1858
      %v2032 = vmul.f32 %v1993, %v1859
      %v2033 = vmul.f32 %v1997, %v1860
      %v2034 = vmul.f32 %v1997, %v1861
      %v2035 = vmul.f32 %v2001, %v1862
      %v2036 = vmul.f32 %v2001, %v1863
      %v2037 = vmul.f32 %v2005, %v1864
      %v2038 = vmul.f32 %v2005, %v1865
      %v2039 = vmul.f32 %v2009, %v1866
      %v2040 = vmul.f32 %v2009, %v1867
      %v2041 = vmul.f32 %v2013, %v1868
      %v2042 = vmul.f32 %v2013, %v1869
      %v2043 = vmul.f32 %v2017, %v1870
      %v2044 = vmul.f32 %v2017, %v1871
      %v2045 = vmul.f32 %v2021, %v1872
      %v2046 = vmul.f32 %v2021, %v1873
      %v2047 = vmul.f32 %v2025, %v1874
      %v2048 = vmul.f32 %v2025, %v1875
      %v2049 = vmul.f32 %v2029, %v1876
      %v2050 = vmul.f32 %v2029, %v1877
      %v2051 = vsel %vm807, %v2031, 0.0
      %v2052 = vsel %vm807, %v2033, 0.0
      %v2053 = vadd.f32 %v2051, %v2052
      %v2054 = vsel %vm807, %v2035, 0.0
      %v2055 = vadd.f32 %v2053, %v2054
      %v2056 = vsel %vm807, %v2037, 0.0
      %v2057 = vadd.f32 %v2055, %v2056
      %v2058 = vsel %vm807, %v2039, 0.0
      %v2059 = vadd.f32 %v2057, %v2058
      %v2060 = vsel %vm807, %v2041, 0.0
      %v2061 = vadd.f32 %v2059, %v2060
      %v2062 = vsel %vm807, %v2043, 0.0
      %v2063 = vadd.f32 %v2061, %v2062
      %v2064 = vsel %vm807, %v2045, 0.0
      %v2065 = vadd.f32 %v2063, %v2064
      %v2066 = vsel %vm807, %v2047, 0.0
      %v2067 = vadd.f32 %v2065, %v2066
      %v2068 = vsel %vm807, %v2049, 0.0
      %v2069 = vadd.f32 %v2067, %v2068
      %v2070 = vsel %vm807, %v2032, 0.0
      %v2071 = vsel %vm807, %v2034, 0.0
      %v2072 = vadd.f32 %v2070, %v2071
      %v2073 = vsel %vm807, %v2036, 0.0
      %v2074 = vadd.f32 %v2072, %v2073
      %v2075 = vsel %vm807, %v2038, 0.0
      %v2076 = vadd.f32 %v2074, %v2075
      %v2077 = vsel %vm807, %v2040, 0.0
      %v2078 = vadd.f32 %v2076, %v2077
      %v2079 = vsel %vm807, %v2042, 0.0
      %v2080 = vadd.f32 %v2078, %v2079
      %v2081 = vsel %vm807, %v2044, 0.0
      %v2082 = vadd.f32 %v2080, %v2081
      %v2083 = vsel %vm807, %v2046, 0.0
      %v2084 = vadd.f32 %v2082, %v2083
      %v2085 = vsel %vm807, %v2048, 0.0
      %v2086 = vadd.f32 %v2084, %v2085
      %v2087 = vsel %vm807, %v2050, 0.0
      %v2088 = vadd.f32 %v2086, %v2087
      %v2089 = vsel %vm807, %v2069, -inf
      %v2090 = vrot.slane %v2089, 4
      %v2091 = vmax.f32 %v2089, %v2090
      %v2092 = vrot.slane %v2091, 2
      %v2093 = vmax.f32 %v2091, %v2092
      %v2094 = vrot.slane %v2093, 1
      %v2095 = vmax.f32 %v2093, %v2094
      %v2096 = vsel %vm807, %v2088, -inf
      %v2097 = vrot.slane %v2096, 4
      %v2098 = vmax.f32 %v2096, %v2097
      %v2099 = vrot.slane %v2098, 2
      %v2100 = vmax.f32 %v2098, %v2099
      %v2101 = vrot.slane %v2100, 1
      %v2102 = vmax.f32 %v2100, %v2101
      %v2103 = vsub.f32 %v2069, %v2095
      %v2104 = vsub.f32 %v2088, %v2102
      %v2105 = vmul.f32 %v2103, 1.442695
      %v2106 = vpow.pop %v2105
      %v2107 = vmul.f32 %v2104, 1.442695
      %v2108 = vpow.pop %v2107
      %v2109 = vsel %vm807, %v2106, 0.0
      %v2110 = vrot.slane %v2109, 4
      %v2111 = vadd.f32 %v2109, %v2110
      %v2112 = vrot.slane %v2111, 2
      %v2113 = vadd.f32 %v2111, %v2112
      %v2114 = vrot.slane %v2113, 1
      %v2115 = vadd.f32 %v2113, %v2114
      %v2116 = vsel %vm807, %v2108, 0.0
      %v2117 = vrot.slane %v2116, 4
      %v2118 = vadd.f32 %v2116, %v2117
      %v2119 = vrot.slane %v2118, 2
      %v2120 = vadd.f32 %v2118, %v2119
      %v2121 = vrot.slane %v2120, 1
      %v2122 = vadd.f32 %v2120, %v2121
      %v2123 = vlog2.pop %v2115
      %v2124 = vmul.f32 %v2123, 0.6931472
      %v2125 = vlog2.pop %v2122
      %v2126 = vmul.f32 %v2125, 0.6931472
      %v2127 = vadd.f32 %v2124, %v2095
      %v2128 = vadd.f32 %v2126, %v2102
      %v2129 = vsub.f32 %v2069, %v2127
      %v2130 = vsub.f32 %v2088, %v2128
      %v2133 = vcombine.low %v2129, %v2130
      %2135 = vst [vmem:[%s649] sm:$0xff] %v2133
      %v2136 = vmul.f32 %v2129, 1.442695
      %v2137 = vpow.pop %v2136
      %v2138 = vmul.f32 %v2130, 1.442695
      %v2139 = vpow.pop %v2138
      %v2142 = vcombine.low %v2137, %v2139
      %2144 = vst [vmem:[%s654] sm:$0xff] %v2142
      %p2145 = scmp.lt.s32.totalorder %s28, 1
      %s2146 = scalar_select %p2145, %s28, 1
      %s2147 = smul.addr %s2146, 2
      %s2148 = smul.addr %s2147, 4
      %s2149 = scalar_lea.vmem %s5, %s2148
      %p2150 = scmp.lt.s32.totalorder %s28, 1
      %s2151 = scalar_select %p2150, %s28, 1
      %s2152 = smul.addr %s2151, 2
      %s2153 = smul.addr %s2152, 4
      %s2154 = scalar_lea.vmem %s6, %s2153
      %p2155 = scmp.lt.s32.totalorder %s28, 1
      %s2156 = scalar_select %p2155, %s28, 1
      %s2157 = smul.addr %s2156, 2
      %s2158 = smul.addr %s2157, 4
      %s2159 = scalar_lea.vmem %s7, %s2158
      %p2160 = scmp.lt.s32.totalorder %s28, 1
      %s2161 = scalar_select %p2160, %s28, 1
      %s2162 = smul.addr %s2161, 2
      %s2163 = smul.addr %s2162, 4
      %s2164 = scalar_lea.vmem %s8, %s2163
      %p2165 = scmp.lt.s32.totalorder %s28, 1
      %s2166 = scalar_select %p2165, %s28, 1
      %s2167 = smul.addr %s2166, 2
      %s2168 = smul.addr %s2167, 4
      %s2169 = scalar_lea.vmem %s9, %s2168
      %p2170 = scmp.lt.s32.totalorder %s28, 1
      %s2171 = scalar_select %p2170, %s28, 1
      %s2172 = smul.addr %s2171, 2
      %s2173 = smul.addr %s2172, 4
      %s2174 = scalar_lea.vmem %s10, %s2173
      %p2175 = scmp.lt.s32.totalorder %s28, 1
      %s2176 = scalar_select %p2175, %s28, 1
      %s2177 = smul.addr %s2176, 2
      %s2178 = smul.addr %s2177, 4
      %s2179 = scalar_lea.vmem %s11, %s2178
      %p2180 = scmp.lt.s32.totalorder %s28, 1
      %s2181 = scalar_select %p2180, %s28, 1
      %s2182 = smul.addr %s2181, 2
      %s2183 = smul.addr %s2182, 4
      %s2184 = scalar_lea.vmem %s12, %s2183
      %p2185 = scmp.lt.s32.totalorder %s28, 1
      %s2186 = scalar_select %p2185, %s28, 1
      %s2187 = smul.addr %s2186, 2
      %s2188 = smul.addr %s2187, 4
      %s2189 = scalar_lea.vmem %s13, %s2188
      %p2190 = scmp.lt.s32.totalorder %s28, 1
      %s2191 = scalar_select %p2190, %s28, 1
      %s2192 = smul.addr %s2191, 2
      %s2193 = smul.addr %s2192, 4
      %s2194 = scalar_lea.vmem %s14, %s2193
      %p2195 = scmp.lt.s32.totalorder %s28, 1
      %s2196 = scalar_select %p2195, %s28, 1
      %s2197 = smul.addr %s2196, 2
      %s2198 = smul.addr %s2197, 4
      %s2199 = scalar_lea.vmem %s15, %s2198
      %p2200 = scmp.lt.s32.totalorder %s28, 1
      %s2201 = scalar_select %p2200, %s28, 1
      %s2202 = smul.addr %s2201, 2
      %s2203 = smul.addr %s2202, 4
      %s2204 = scalar_lea.vmem %s16, %s2203
      // Predicated region
      $region41: #{sample_net_forward.1} parent=39 // pred_check
        %p2205 = pneg %p156
      $region42: #{sample_net_forward.1} parent=39 // pred_check_branch
        %2207 = sbr.rel (%p2205) target = $region44
      $region43: #{sample_net_forward.1} parent=39 // pred_region
        _
      $region44: #{sample_net_forward.1} parent=39 // pred_fallthru
        _
      // Predicated region
      $region45: #{sample_net_forward.1} parent=39 // pred_check
        %p2208 = pneg %p182
      $region46: #{sample_net_forward.1} parent=39 // pred_check_branch
        %2210 = sbr.rel (%p2208) target = $region48
      $region47: #{sample_net_forward.1} parent=39 // pred_region
        _
      $region48: #{sample_net_forward.1} parent=39 // pred_fallthru
        _
      // Predicated region
      $region49: #{sample_net_forward.1} parent=39 // pred_check
        %p2211 = pneg %p208
      $region50: #{sample_net_forward.1} parent=39 // pred_check_branch
        %2213 = sbr.rel (%p2211) target = $region52
      $region51: #{sample_net_forward.1} parent=39 // pred_region
        _
      $region52: #{sample_net_forward.1} parent=39 // pred_fallthru
        _
      // Predicated region
      $region53: #{sample_net_forward.1} parent=39 // pred_check
        %p2214 = pneg %p234
      $region54: #{sample_net_forward.1} parent=39 // pred_check_branch
        %2216 = sbr.rel (%p2214) target = $region56
      $region55: #{sample_net_forward.1} parent=39 // pred_region
        _
      $region56: #{sample_net_forward.1} parent=39 // pred_fallthru
        _
      // Predicated region
      $region57: #{sample_net_forward.1} parent=39 // pred_check
        %p2217 = pneg %p260
      $region58: #{sample_net_forward.1} parent=39 // pred_check_branch
        %2219 = sbr.rel (%p2217) target = $region60
      $region59: #{sample_net_forward.1} parent=39 // pred_region
        _
      $region60: #{sample_net_forward.1} parent=39 // pred_fallthru
        _
      // Predicated region
      $region61: #{sample_net_forward.1} parent=39 // pred_check
        %p2220 = pneg %p286
      $region62: #{sample_net_forward.1} parent=39 // pred_check_branch
        %2222 = sbr.rel (%p2220) target = $region64
      $region63: #{sample_net_forward.1} parent=39 // pred_region
        _
      $region64: #{sample_net_forward.1} parent=39 // pred_fallthru
        _
      // Predicated region
      $region65: #{sample_net_forward.1} parent=39 // pred_check
        %p2223 = pneg %p312
      $region66: #{sample_net_forward.1} parent=39 // pred_check_branch
        %2225 = sbr.rel (%p2223) target = $region68
      $region67: #{sample_net_forward.1} parent=39 // pred_region
        _
      $region68: #{sample_net_forward.1} parent=39 // pred_fallthru
        _
      // Predicated region
      $region69: #{sample_net_forward.1} parent=39 // pred_check
        %p2226 = pneg %p338
      $region70: #{sample_net_forward.1} parent=39 // pred_check_branch
        %2228 = sbr.rel (%p2226) target = $region72
      $region71: #{sample_net_forward.1} parent=39 // pred_region
        _
      $region72: #{sample_net_forward.1} parent=39 // pred_fallthru
        _
      // Predicated region
      $region73: #{sample_net_forward.1} parent=39 // pred_check
        %p2229 = pneg %p364
      $region74: #{sample_net_forward.1} parent=39 // pred_check_branch
        %2231 = sbr.rel (%p2229) target = $region76
      $region75: #{sample_net_forward.1} parent=39 // pred_region
        _
      $region76: #{sample_net_forward.1} parent=39 // pred_fallthru
        _
      // Predicated region
      $region77: #{sample_net_forward.1} parent=39 // pred_check
        %p2232 = pneg %p390
      $region78: #{sample_net_forward.1} parent=39 // pred_check_branch
        %2234 = sbr.rel (%p2232) target = $region80
      $region79: #{sample_net_forward.1} parent=39 // pred_region
        _
      $region80: #{sample_net_forward.1} parent=39 // pred_fallthru
        _
      // Predicated region
      $region81: #{sample_net_forward.1} parent=39 // pred_check
        %p2235 = pneg %p416
      $region82: #{sample_net_forward.1} parent=39 // pred_check_branch
        %2237 = sbr.rel (%p2235) target = $region84
      $region83: #{sample_net_forward.1} parent=39 // pred_region
        _
      $region84: #{sample_net_forward.1} parent=39 // pred_fallthru
        _
      // Predicated region
      $region85: #{sample_net_forward.1} parent=39 // pred_check
        %p2238 = pneg %p442
      $region86: #{sample_net_forward.1} parent=39 // pred_check_branch
        %2240 = sbr.rel (%p2238) target = $region88
      $region87: #{sample_net_forward.1} parent=39 // pred_region
        _
      $region88: #{sample_net_forward.1} parent=39 // pred_fallthru
        _
    $region40: #{sample_net_forward.1} parent=5 // pred_fallthru
      _
    %p2241 = scmp.le.s32.totalorder 2, %s23
    // Predicated region
    $region89: #{sample_net_forward.1} parent=5 // pred_check
      %p2242 = pneg %p2241
    $region90: #{sample_net_forward.1} parent=5 // pred_check_branch
      %2244 = sbr.rel (%p2242) target = $region92
    $region91: #{sample_net_forward.1} parent=5 // pred_region
      %s2245 = ssub.s32 %s23, 2
      // Predicated region
      $region93: #{sample_net_forward.1} parent=91 // pred_check
        %p2246 = pneg %p162
      $region94: #{sample_net_forward.1} parent=91 // pred_check_branch
        %2248 = sbr.rel (%p2246) target = $region96
      $region95: #{sample_net_forward.1} parent=91 // pred_region
        %p2249 = scmp.lt.s32.totalorder %s29, 1
        %s2250 = scalar_select %p2249, %s29, 1
        %s2251 = smul.addr %s2250, 2
        %s2252 = smul.addr %s2251, 4
        %s2253 = scalar_lea.vmem %s5, %s2252
      $region96: #{sample_net_forward.1} parent=91 // pred_fallthru
        _
      // Predicated region
      $region97: #{sample_net_forward.1} parent=91 // pred_check
        %p2254 = pneg %p188
      $region98: #{sample_net_forward.1} parent=91 // pred_check_branch
        %2256 = sbr.rel (%p2254) target = $region100
      $region99: #{sample_net_forward.1} parent=91 // pred_region
        %p2257 = scmp.lt.s32.totalorder %s29, 1
        %s2258 = scalar_select %p2257, %s29, 1
        %s2259 = smul.addr %s2258, 2
        %s2260 = smul.addr %s2259, 4
        %s2261 = scalar_lea.vmem %s6, %s2260
      $region100: #{sample_net_forward.1} parent=91 // pred_fallthru
        _
      // Predicated region
      $region101: #{sample_net_forward.1} parent=91 // pred_check
        %p2262 = pneg %p214
      $region102: #{sample_net_forward.1} parent=91 // pred_check_branch
        %2264 = sbr.rel (%p2262) target = $region104
      $region103: #{sample_net_forward.1} parent=91 // pred_region
        %p2265 = scmp.lt.s32.totalorder %s29, 1
        %s2266 = scalar_select %p2265, %s29, 1
        %s2267 = smul.addr %s2266, 2
        %s2268 = smul.addr %s2267, 4
        %s2269 = scalar_lea.vmem %s7, %s2268
      $region104: #{sample_net_forward.1} parent=91 // pred_fallthru
        _
      // Predicated region
      $region105: #{sample_net_forward.1} parent=91 // pred_check
        %p2270 = pneg %p240
      $region106: #{sample_net_forward.1} parent=91 // pred_check_branch
        %2272 = sbr.rel (%p2270) target = $region108
      $region107: #{sample_net_forward.1} parent=91 // pred_region
        %p2273 = scmp.lt.s32.totalorder %s29, 1
        %s2274 = scalar_select %p2273, %s29, 1
        %s2275 = smul.addr %s2274, 2
        %s2276 = smul.addr %s2275, 4
        %s2277 = scalar_lea.vmem %s8, %s2276
      $region108: #{sample_net_forward.1} parent=91 // pred_fallthru
        _
      // Predicated region
      $region109: #{sample_net_forward.1} parent=91 // pred_check
        %p2278 = pneg %p266
      $region110: #{sample_net_forward.1} parent=91 // pred_check_branch
        %2280 = sbr.rel (%p2278) target = $region112
      $region111: #{sample_net_forward.1} parent=91 // pred_region
        %p2281 = scmp.lt.s32.totalorder %s29, 1
        %s2282 = scalar_select %p2281, %s29, 1
        %s2283 = smul.addr %s2282, 2
        %s2284 = smul.addr %s2283, 4
        %s2285 = scalar_lea.vmem %s9, %s2284
      $region112: #{sample_net_forward.1} parent=91 // pred_fallthru
        _
      // Predicated region
      $region113: #{sample_net_forward.1} parent=91 // pred_check
        %p2286 = pneg %p292
      $region114: #{sample_net_forward.1} parent=91 // pred_check_branch
        %2288 = sbr.rel (%p2286) target = $region116
      $region115: #{sample_net_forward.1} parent=91 // pred_region
        %p2289 = scmp.lt.s32.totalorder %s29, 1
        %s2290 = scalar_select %p2289, %s29, 1
        %s2291 = smul.addr %s2290, 2
        %s2292 = smul.addr %s2291, 4
        %s2293 = scalar_lea.vmem %s10, %s2292
      $region116: #{sample_net_forward.1} parent=91 // pred_fallthru
        _
      // Predicated region
      $region117: #{sample_net_forward.1} parent=91 // pred_check
        %p2294 = pneg %p318
      $region118: #{sample_net_forward.1} parent=91 // pred_check_branch
        %2296 = sbr.rel (%p2294) target = $region120
      $region119: #{sample_net_forward.1} parent=91 // pred_region
        %p2297 = scmp.lt.s32.totalorder %s29, 1
        %s2298 = scalar_select %p2297, %s29, 1
        %s2299 = smul.addr %s2298, 2
        %s2300 = smul.addr %s2299, 4
        %s2301 = scalar_lea.vmem %s11, %s2300
      $region120: #{sample_net_forward.1} parent=91 // pred_fallthru
        _
      // Predicated region
      $region121: #{sample_net_forward.1} parent=91 // pred_check
        %p2302 = pneg %p344
      $region122: #{sample_net_forward.1} parent=91 // pred_check_branch
        %2304 = sbr.rel (%p2302) target = $region124
      $region123: #{sample_net_forward.1} parent=91 // pred_region
        %p2305 = scmp.lt.s32.totalorder %s29, 1
        %s2306 = scalar_select %p2305, %s29, 1
        %s2307 = smul.addr %s2306, 2
        %s2308 = smul.addr %s2307, 4
        %s2309 = scalar_lea.vmem %s12, %s2308
      $region124: #{sample_net_forward.1} parent=91 // pred_fallthru
        _
      // Predicated region
      $region125: #{sample_net_forward.1} parent=91 // pred_check
        %p2310 = pneg %p370
      $region126: #{sample_net_forward.1} parent=91 // pred_check_branch
        %2312 = sbr.rel (%p2310) target = $region128
      $region127: #{sample_net_forward.1} parent=91 // pred_region
        %p2313 = scmp.lt.s32.totalorder %s29, 1
        %s2314 = scalar_select %p2313, %s29, 1
        %s2315 = smul.addr %s2314, 2
        %s2316 = smul.addr %s2315, 4
        %s2317 = scalar_lea.vmem %s13, %s2316
      $region128: #{sample_net_forward.1} parent=91 // pred_fallthru
        _
      // Predicated region
      $region129: #{sample_net_forward.1} parent=91 // pred_check
        %p2318 = pneg %p396
      $region130: #{sample_net_forward.1} parent=91 // pred_check_branch
        %2320 = sbr.rel (%p2318) target = $region132
      $region131: #{sample_net_forward.1} parent=91 // pred_region
        %p2321 = scmp.lt.s32.totalorder %s29, 1
        %s2322 = scalar_select %p2321, %s29, 1
        %s2323 = smul.addr %s2322, 2
        %s2324 = smul.addr %s2323, 4
        %s2325 = scalar_lea.vmem %s14, %s2324
      $region132: #{sample_net_forward.1} parent=91 // pred_fallthru
        _
      // Predicated region
      $region133: #{sample_net_forward.1} parent=91 // pred_check
        %p2326 = pneg %p422
      $region134: #{sample_net_forward.1} parent=91 // pred_check_branch
        %2328 = sbr.rel (%p2326) target = $region136
      $region135: #{sample_net_forward.1} parent=91 // pred_region
        %p2329 = scmp.lt.s32.totalorder %s29, 1
        %s2330 = scalar_select %p2329, %s29, 1
        %s2331 = smul.addr %s2330, 2
        %s2332 = smul.addr %s2331, 4
        %s2333 = scalar_lea.vmem %s15, %s2332
      $region136: #{sample_net_forward.1} parent=91 // pred_fallthru
        _
      // Predicated region
      $region137: #{sample_net_forward.1} parent=91 // pred_check
        %p2334 = pneg %p448
      $region138: #{sample_net_forward.1} parent=91 // pred_check_branch
        %2336 = sbr.rel (%p2334) target = $region140
      $region139: #{sample_net_forward.1} parent=91 // pred_region
        %p2337 = scmp.lt.s32.totalorder %s29, 1
        %s2338 = scalar_select %p2337, %s29, 1
        %s2339 = smul.addr %s2338, 2
        %s2340 = smul.addr %s2339, 4
        %s2341 = scalar_lea.vmem %s16, %s2340
      $region140: #{sample_net_forward.1} parent=91 // pred_fallthru
        _
    $region92: #{sample_net_forward.1} parent=5 // pred_fallthru
      _
  $region6: #{sample_net_forward.1} parent=0 // loop_footer
    %s27 = sadd.s32 1, %s23
  $region7: #{sample_net_forward.1} parent=0 // loop_footer_branch
    %22 = sbr.rel target = $region3
  $region8: #{sample_net_forward.1} parent=0 // loop_exit
    _

</llo_original>
